<compile_context>
chip_gen: v6e
topology: v6e:2x2x1
jax: 0.10.0
libtpu: 0.0.40
codegen_flags: <defaults>
</compile_context>

<pallas_src>
import functools

import jax
import jax.numpy as jnp
from jax.experimental import pallas as pl
from jax.experimental.pallas import tpu as pltpu


def mlp_kernel(x_ref,
               w1_ref, b1_ref,
               w2_ref, b2_ref,
               w3_ref, b3_ref,
               w4_ref, b4_ref,
               w5_ref, b5_ref,
               o_ref):
    # Batch-on-lanes orientation: activations are (features, tile_b).
    # W stays in PyTorch (out, in) layout and is used directly as the matmul
    # LHS: z = W @ h  contracts W's last dim against h's first dim (MXU-native,
    # no weight relayout). Accumulation and the bias/ReLU epilogue are f32.
    def dense_relu(h, w_ref, b_ref):
        w = w_ref[...]
        z = jnp.dot(w, h.astype(w.dtype), preferred_element_type=jnp.float32)
        return jnp.maximum(z + b_ref[...], 0.0)

    h = x_ref[...]                         # (600, tile_b), bf16 or f32
    h = dense_relu(h, w1_ref, b1_ref)      # (300, tile_b) f32
    h = dense_relu(h, w2_ref, b2_ref)      # (150, tile_b) f32
    h = dense_relu(h, w3_ref, b3_ref)      # (70,  tile_b) f32
    h = dense_relu(h, w4_ref, b4_ref)      # (20,  tile_b) f32
    # Final 20 -> 1 layer: VPU multiply + sublane reduce -> (1, tile_b),
    # already lane-dense for the output store.  w5_ref is (20, 1) f32,
    # b5_ref is (1, 1) f32.
    o_ref[...] = (jnp.sum(h * w5_ref[...], axis=0, keepdims=True)
                  + b5_ref[...]).astype(o_ref.dtype)


@functools.partial(jax.jit, static_argnames=("tile_b", "use_bf16"))
def maml_coat_forward(x, params, *, tile_b=1024, use_bf16=True):
    """x: (B, 600) float32. params: list of (W, b), W shaped (out, in) like PyTorch.

    Returns (B, 1) float32, matching MAML_coat.forward / parameterised.
    """
    B, f_in = x.shape
    n_layers = len(params)

    # --- tile selection (batch lives on the lane axis -> multiples of 128) ---
    if B <= tile_b:
        if B >= 256:
            # Split small batches into (at least) two tiles so both v7x
            # TensorCores get work (harmless on single-TC v5e/v6e).
            tile_b = min(B, ((pl.cdiv(B, 2) + 127) // 128) * 128)
        else:
            tile_b = B                      # single full-extent tile
    else:
        tile_b = max(128, (tile_b // 128) * 128)
    grid = (pl.cdiv(B, tile_b),)

    w_dtype = jnp.bfloat16 if use_bf16 else jnp.float32
    x_dtype = jnp.bfloat16 if use_bf16 else jnp.float32

    # Lane-major batch: transpose once at the HBM boundary (layout plumbing,
    # done after the dtype cast so the transpose moves half the bytes in bf16).
    x_t = jnp.asarray(x, x_dtype).T         # (600, B)

    kernel_args = [x_t]
    in_specs = [pl.BlockSpec((f_in, tile_b), lambda i: (0, i))]

    for li, (w, b) in enumerate(params):
        is_last = (li == n_layers - 1)
        if is_last:
            # Last layer runs on the VPU reduce path: keep f32, as a column.
            w_arr = jnp.asarray(w, jnp.float32).reshape(-1, 1)     # (20, 1)
            b_arr = jnp.asarray(b, jnp.float32).reshape(1, 1)      # (1, 1)
        else:
            # PyTorch (out, in) layout used directly as the matmul LHS.
            w_arr = jnp.asarray(w, w_dtype)                        # (out, in)
            b_arr = jnp.asarray(b, jnp.float32).reshape(-1, 1)     # (out, 1)
        kernel_args.append(w_arr)
        kernel_args.append(b_arr)
        # Full-array blocks with a constant block index: VMEM-resident across
        # all batch tiles (no re-DMA per grid step).
        in_specs.append(pl.BlockSpec(w_arr.shape, lambda i: (0, 0)))
        in_specs.append(pl.BlockSpec(b_arr.shape, lambda i: (0, 0)))

    flops = 2 * B * sum(int(w.shape[0]) * int(w.shape[1]) for (w, _) in params)
    bytes_accessed = (
        B * f_in * (2 if use_bf16 else 4)
        + sum(int(w.size) * (2 if (use_bf16 and i < n_layers - 1) else 4)
              + int(b.size) * 4
              for i, (w, b) in enumerate(params))
        + B * 4)

    out = pl.pallas_call(
        mlp_kernel,
        out_shape=jax.ShapeDtypeStruct((1, B), jnp.float32),
        grid=grid,
        in_specs=in_specs,
        # Lane-dense output: batch on lanes -> unmasked-ish vst path.
        out_specs=pl.BlockSpec((1, tile_b), lambda i: (0, i)),
        compiler_params=pltpu.CompilerParams(
            dimension_semantics=("parallel",),
            vmem_limit_bytes=48 * 1024 * 1024),
        cost_estimate=pl.CostEstimate(flops=flops, transcendentals=0,
                                      bytes_accessed=bytes_accessed),
    )(*kernel_args)

    # (1, B) -> (B, 1): free row-major reshape, matches the PyTorch module.
    return out.reshape(B, 1)


def init_params(key):
    """Deterministic init mimicking PyTorch nn.Linear default U[-1/sqrt(fan_in), ...]."""
    dims = [(600, 300), (300, 150), (150, 70), (70, 20), (20, 1)]
    params = []
    for (fan_in, fan_out) in dims:
        key, kw, kb = jax.random.split(key, 3)
        bound = 1.0 / (fan_in ** 0.5)
        w = jax.random.uniform(kw, (fan_out, fan_in), jnp.float32, -bound, bound)
        b = jax.random.uniform(kb, (fan_out,), jnp.float32, -bound, bound)
        params.append((w, b))
    return params


def reference_forward(x, params, use_bf16=True):
    """Pure-JAX reference matching the kernel's numerics."""
    h = x.astype(jnp.float32)
    n = len(params)
    for i, (w, b) in enumerate(params):
        is_last = (i == n - 1)
        if use_bf16 and not is_last:
            z = jnp.dot(h.astype(jnp.bfloat16), w.astype(jnp.bfloat16).T,
                        preferred_element_type=jnp.float32) + b
        else:
            z = h @ w.T + b
        h = z if is_last else jnp.maximum(z, 0.0)
    return h


if __name__ == "__main__":
    key = jax.random.PRNGKey(0)
    key, kx_small, kx_big = jax.random.split(key, 3)
    params = init_params(key)

    # --- Test 1: tiny batch (single full-extent tile), f32 path ---------------
    B0 = 8
    x0 = jax.random.normal(kx_small, (B0, 600), jnp.float32)
    out0 = jax.block_until_ready(maml_coat_forward(x0, params, use_bf16=False))
    ref0 = reference_forward(x0, params, use_bf16=False)
    assert out0.shape == (B0, 1), out0.shape
    assert jnp.allclose(out0, ref0, atol=1e-3, rtol=1e-3), (
        float(jnp.max(jnp.abs(out0 - ref0))))

    # --- Test 2: multi-tile grid with a partial last (lane) tile, f32 path ----
    B1 = 520
    x1 = jax.random.normal(kx_big, (B1, 600), jnp.float32)
    out1 = jax.block_until_ready(
        maml_coat_forward(x1, params, tile_b=256, use_bf16=False))
    ref1 = reference_forward(x1, params, use_bf16=False)
    assert out1.shape == (B1, 1), out1.shape
    assert jnp.allclose(out1, ref1, atol=1e-3, rtol=1e-3), (
        float(jnp.max(jnp.abs(out1 - ref1))))

    # --- Test 3: default path (bf16 matmuls, f32 accumulate, auto tile split) --
    out2 = jax.block_until_ready(maml_coat_forward(x1, params))
    ref2_bf16 = reference_forward(x1, params, use_bf16=True)
    assert out2.shape == (B1, 1), out2.shape
    assert jnp.allclose(out2, ref2_bf16, atol=5e-3, rtol=5e-3), (
        float(jnp.max(jnp.abs(out2 - ref2_bf16))))
    # Sanity vs the f32 reference (looser: bf16 matmul inputs).
    assert jnp.allclose(out2, ref1, atol=5e-2, rtol=5e-2), (
        float(jnp.max(jnp.abs(out2 - ref1))))

    print("KERNEL_OK")
</pallas_src>

<mosaic_0001>
module attributes {stable_mosaic.version = 11 : i64} {
  func.func @mlp_kernel(%arg0: i32, %arg1: memref<600x8xf32, #tpu.memory_space<vmem>>, %arg2: memref<300x600xf32, #tpu.memory_space<vmem>>, %arg3: memref<300x1xf32, #tpu.memory_space<vmem>>, %arg4: memref<150x300xf32, #tpu.memory_space<vmem>>, %arg5: memref<150x1xf32, #tpu.memory_space<vmem>>, %arg6: memref<70x150xf32, #tpu.memory_space<vmem>>, %arg7: memref<70x1xf32, #tpu.memory_space<vmem>>, %arg8: memref<20x70xf32, #tpu.memory_space<vmem>>, %arg9: memref<20x1xf32, #tpu.memory_space<vmem>>, %arg10: memref<20x1xf32, #tpu.memory_space<vmem>>, %arg11: memref<1x1xf32, #tpu.memory_space<vmem>>, %arg12: memref<1x8xf32, #tpu.memory_space<vmem>>) attributes {dimension_semantics = [#tpu.dimension_semantics<parallel>], iteration_bounds = array<i64: 1>, scalar_prefetch = 0 : i64, scratch_operands = 0 : i64, tpu.core_type = #tpu.core_type<tc>, window_params = [{transform_indices = @transform_0, window_bounds = array<i64: 600, 8>}, {pipeline_mode = #tpu.pipeline_mode<synchronous>, transform_indices = @transform_1, window_bounds = array<i64: 300, 600>}, {pipeline_mode = #tpu.pipeline_mode<synchronous>, transform_indices = @transform_2, window_bounds = array<i64: 300, 1>}, {pipeline_mode = #tpu.pipeline_mode<synchronous>, transform_indices = @transform_3, window_bounds = array<i64: 150, 300>}, {pipeline_mode = #tpu.pipeline_mode<synchronous>, transform_indices = @transform_4, window_bounds = array<i64: 150, 1>}, {pipeline_mode = #tpu.pipeline_mode<synchronous>, transform_indices = @transform_5, window_bounds = array<i64: 70, 150>}, {pipeline_mode = #tpu.pipeline_mode<synchronous>, transform_indices = @transform_6, window_bounds = array<i64: 70, 1>}, {pipeline_mode = #tpu.pipeline_mode<synchronous>, transform_indices = @transform_7, window_bounds = array<i64: 20, 70>}, {pipeline_mode = #tpu.pipeline_mode<synchronous>, transform_indices = @transform_8, window_bounds = array<i64: 20, 1>}, {pipeline_mode = #tpu.pipeline_mode<synchronous>, transform_indices = @transform_9, window_bounds = array<i64: 20, 1>}, {pipeline_mode = #tpu.pipeline_mode<synchronous>, transform_indices = @transform_10, window_bounds = array<i64: 1, 1>}, {transform_indices = @transform_11, window_bounds = array<i64: 1, 8>}]} {
    %c0 = arith.constant 0 : index
    %c0_0 = arith.constant 0 : index
    %0 = vector.load %arg1[%c0, %c0_0] : memref<600x8xf32, #tpu.memory_space<vmem>>, vector<600x8xf32>
    %c0_1 = arith.constant 0 : index
    %c0_2 = arith.constant 0 : index
    %1 = vector.load %arg2[%c0_1, %c0_2] : memref<300x600xf32, #tpu.memory_space<vmem>>, vector<300x600xf32>
    %cst = arith.constant dense<0.000000e+00> : vector<300x8xf32>
    %2 = tpu.matmul %1, %0, %cst {dimension_numbers = #tpu.dot_dimension_numbers<[1], [0], [0], [1], [0, 0, 1, 1], [], []>} : vector<300x600xf32>, vector<600x8xf32>, vector<300x8xf32> -> vector<300x8xf32>
    %c0_3 = arith.constant 0 : index
    %c0_4 = arith.constant 0 : index
    %3 = vector.load %arg3[%c0_3, %c0_4] : memref<300x1xf32, #tpu.memory_space<vmem>>, vector<300x1xf32>
    %4 = vector.broadcast %3 : vector<300x1xf32> to vector<300x8xf32>
    %5 = arith.addf %2, %4 : vector<300x8xf32>
    %cst_5 = arith.constant 0.000000e+00 : f32
    %6 = vector.broadcast %cst_5 : f32 to vector<300x8xf32>
    %7 = arith.maximumf %5, %6 : vector<300x8xf32>
    %c0_6 = arith.constant 0 : index
    %c0_7 = arith.constant 0 : index
    %8 = vector.load %arg4[%c0_6, %c0_7] : memref<150x300xf32, #tpu.memory_space<vmem>>, vector<150x300xf32>
    %cst_8 = arith.constant dense<0.000000e+00> : vector<150x8xf32>
    %9 = tpu.matmul %8, %7, %cst_8 {dimension_numbers = #tpu.dot_dimension_numbers<[1], [0], [0], [1], [0, 0, 1, 1], [], []>} : vector<150x300xf32>, vector<300x8xf32>, vector<150x8xf32> -> vector<150x8xf32>
    %c0_9 = arith.constant 0 : index
    %c0_10 = arith.constant 0 : index
    %10 = vector.load %arg5[%c0_9, %c0_10] : memref<150x1xf32, #tpu.memory_space<vmem>>, vector<150x1xf32>
    %11 = vector.broadcast %10 : vector<150x1xf32> to vector<150x8xf32>
    %12 = arith.addf %9, %11 : vector<150x8xf32>
    %cst_11 = arith.constant 0.000000e+00 : f32
    %13 = vector.broadcast %cst_11 : f32 to vector<150x8xf32>
    %14 = arith.maximumf %12, %13 : vector<150x8xf32>
    %c0_12 = arith.constant 0 : index
    %c0_13 = arith.constant 0 : index
    %15 = vector.load %arg6[%c0_12, %c0_13] : memref<70x150xf32, #tpu.memory_space<vmem>>, vector<70x150xf32>
    %cst_14 = arith.constant dense<0.000000e+00> : vector<70x8xf32>
    %16 = tpu.matmul %15, %14, %cst_14 {dimension_numbers = #tpu.dot_dimension_numbers<[1], [0], [0], [1], [0, 0, 1, 1], [], []>} : vector<70x150xf32>, vector<150x8xf32>, vector<70x8xf32> -> vector<70x8xf32>
    %c0_15 = arith.constant 0 : index
    %c0_16 = arith.constant 0 : index
    %17 = vector.load %arg7[%c0_15, %c0_16] : memref<70x1xf32, #tpu.memory_space<vmem>>, vector<70x1xf32>
    %18 = vector.broadcast %17 : vector<70x1xf32> to vector<70x8xf32>
    %19 = arith.addf %16, %18 : vector<70x8xf32>
    %cst_17 = arith.constant 0.000000e+00 : f32
    %20 = vector.broadcast %cst_17 : f32 to vector<70x8xf32>
    %21 = arith.maximumf %19, %20 : vector<70x8xf32>
    %c0_18 = arith.constant 0 : index
    %c0_19 = arith.constant 0 : index
    %22 = vector.load %arg8[%c0_18, %c0_19] : memref<20x70xf32, #tpu.memory_space<vmem>>, vector<20x70xf32>
    %cst_20 = arith.constant dense<0.000000e+00> : vector<20x8xf32>
    %23 = tpu.matmul %22, %21, %cst_20 {dimension_numbers = #tpu.dot_dimension_numbers<[1], [0], [0], [1], [0, 0, 1, 1], [], []>} : vector<20x70xf32>, vector<70x8xf32>, vector<20x8xf32> -> vector<20x8xf32>
    %c0_21 = arith.constant 0 : index
    %c0_22 = arith.constant 0 : index
    %24 = vector.load %arg9[%c0_21, %c0_22] : memref<20x1xf32, #tpu.memory_space<vmem>>, vector<20x1xf32>
    %25 = vector.broadcast %24 : vector<20x1xf32> to vector<20x8xf32>
    %26 = arith.addf %23, %25 : vector<20x8xf32>
    %cst_23 = arith.constant 0.000000e+00 : f32
    %27 = vector.broadcast %cst_23 : f32 to vector<20x8xf32>
    %28 = arith.maximumf %26, %27 : vector<20x8xf32>
    %c0_24 = arith.constant 0 : index
    %c0_25 = arith.constant 0 : index
    %29 = vector.load %arg10[%c0_24, %c0_25] : memref<20x1xf32, #tpu.memory_space<vmem>>, vector<20x1xf32>
    %30 = vector.broadcast %29 : vector<20x1xf32> to vector<20x8xf32>
    %31 = arith.mulf %28, %30 : vector<20x8xf32>
    %cst_26 = arith.constant dense<0.000000e+00> : vector<8xf32>
    %32 = vector.multi_reduction <add>, %31, %cst_26 [0] : vector<20x8xf32> to vector<8xf32>
    %33 = vector.shape_cast %32 : vector<8xf32> to vector<1x8xf32>
    %c0_27 = arith.constant 0 : index
    %c0_28 = arith.constant 0 : index
    %34 = vector.load %arg11[%c0_27, %c0_28] : memref<1x1xf32, #tpu.memory_space<vmem>>, vector<1x1xf32>
    %35 = vector.broadcast %34 : vector<1x1xf32> to vector<1x8xf32>
    %36 = arith.addf %33, %35 : vector<1x8xf32>
    %c0_29 = arith.constant 0 : index
    %c0_30 = arith.constant 0 : index
    %37 = vector.load %arg12[%c0_29, %c0_30] : memref<1x8xf32, #tpu.memory_space<vmem>>, vector<1x8xf32>
    tpu.vector_store %arg12[%c0_29, %c0_30], %36 {strides = array<i32>} : memref<1x8xf32, #tpu.memory_space<vmem>>, vector<1x8xf32>,
    return
  }
  func.func @transform_0(%arg0: i32) -> (i32, i32) {
    %c0_i32 = arith.constant 0 : i32
    %c0_i32_0 = arith.constant 0 : i32
    return %c0_i32, %arg0 : i32, i32
  }
  func.func @transform_1(%arg0: i32) -> (i32, i32) {
    %c0_i32 = arith.constant 0 : i32
    %c0_i32_0 = arith.constant 0 : i32
    %c0_i32_1 = arith.constant 0 : i32
    return %c0_i32, %c0_i32_0 : i32, i32
  }
  func.func @transform_2(%arg0: i32) -> (i32, i32) {
    %c0_i32 = arith.constant 0 : i32
    %c0_i32_0 = arith.constant 0 : i32
    %c0_i32_1 = arith.constant 0 : i32
    return %c0_i32, %c0_i32_0 : i32, i32
  }
  func.func @transform_3(%arg0: i32) -> (i32, i32) {
    %c0_i32 = arith.constant 0 : i32
    %c0_i32_0 = arith.constant 0 : i32
    %c0_i32_1 = arith.constant 0 : i32
    return %c0_i32, %c0_i32_0 : i32, i32
  }
  func.func @transform_4(%arg0: i32) -> (i32, i32) {
    %c0_i32 = arith.constant 0 : i32
    %c0_i32_0 = arith.constant 0 : i32
    %c0_i32_1 = arith.constant 0 : i32
    return %c0_i32, %c0_i32_0 : i32, i32
  }
  func.func @transform_5(%arg0: i32) -> (i32, i32) {
    %c0_i32 = arith.constant 0 : i32
    %c0_i32_0 = arith.constant 0 : i32
    %c0_i32_1 = arith.constant 0 : i32
    return %c0_i32, %c0_i32_0 : i32, i32
  }
  func.func @transform_6(%arg0: i32) -> (i32, i32) {
    %c0_i32 = arith.constant 0 : i32
    %c0_i32_0 = arith.constant 0 : i32
    %c0_i32_1 = arith.constant 0 : i32
    return %c0_i32, %c0_i32_0 : i32, i32
  }
  func.func @transform_7(%arg0: i32) -> (i32, i32) {
    %c0_i32 = arith.constant 0 : i32
    %c0_i32_0 = arith.constant 0 : i32
    %c0_i32_1 = arith.constant 0 : i32
    return %c0_i32, %c0_i32_0 : i32, i32
  }
  func.func @transform_8(%arg0: i32) -> (i32, i32) {
    %c0_i32 = arith.constant 0 : i32
    %c0_i32_0 = arith.constant 0 : i32
    %c0_i32_1 = arith.constant 0 : i32
    return %c0_i32, %c0_i32_0 : i32, i32
  }
  func.func @transform_9(%arg0: i32) -> (i32, i32) {
    %c0_i32 = arith.constant 0 : i32
    %c0_i32_0 = arith.constant 0 : i32
    %c0_i32_1 = arith.constant 0 : i32
    return %c0_i32, %c0_i32_0 : i32, i32
  }
  func.func @transform_10(%arg0: i32) -> (i32, i32) {
    %c0_i32 = arith.constant 0 : i32
    %c0_i32_0 = arith.constant 0 : i32
    %c0_i32_1 = arith.constant 0 : i32
    return %c0_i32, %c0_i32_0 : i32, i32
  }
  func.func @transform_11(%arg0: i32) -> (i32, i32) {
    %c0_i32 = arith.constant 0 : i32
    %c0_i32_0 = arith.constant 0 : i32
    return %c0_i32, %arg0 : i32, i32
  }
}

</mosaic_0001>

<llo_original>
// kernel: maml_coat_forward.1
$region0: #{maml_coat_forward.1}
  #allocation0 [shape = 'u32[]', space=smem, size = 0x4, offset = 0x4, fixed_abs, tag = 'smem constant byte address 0x4 - core index']
  #allocation1 [shape = 'u32[144,128]{1,0:T(1,128)}', space=vmem, size = 0x12000, scoped, tag = 'internal scratch']
  #allocation2 [shape = 'f32[1,1]{1,0:T(1,128)S(1)}', space=vmem, size = 0x200, scoped, tag = 'scoped memory for maml_coat_forward.1']
  %s0 = inlined_call_operand.vmem [shape: f32[600,8], index: 0, kind: input, shape index: {}]
  %s1 = inlined_call_operand.hbm [shape: f32[300,600], index: 1, kind: input, shape index: {}]
  %s2 = inlined_call_operand.vmem [shape: f32[300,1], index: 2, kind: input, shape index: {}]
  %s3 = inlined_call_operand.vmem [shape: f32[150,300], index: 3, kind: input, shape index: {}]
  %s4 = inlined_call_operand.vmem [shape: f32[150,1], index: 4, kind: input, shape index: {}]
  %s5 = inlined_call_operand.vmem [shape: f32[70,150], index: 5, kind: input, shape index: {}]
  %s6 = inlined_call_operand.vmem [shape: f32[70,1], index: 6, kind: input, shape index: {}]
  %s7 = inlined_call_operand.vmem [shape: f32[20,70], index: 7, kind: input, shape index: {}]
  %s8 = inlined_call_operand.vmem [shape: f32[20,1], index: 8, kind: input, shape index: {}]
  %s9 = inlined_call_operand.vmem [shape: f32[20,1], index: 9, kind: input, shape index: {}]
  %s10 = inlined_call_operand.<no memory space> [shape: f32[1,1], index: 10, kind: input, shape index: {}]
  %s11 = inlined_call_operand.hbm [shape: f32[1,8], index: 11, kind: output, shape index: {}]
  %s12 = sld [smem:[#allocation0]]
  $region58: #{maml_coat_forward.1} parent=0
    _
  %s14 = ssub.s32 1, %s12
  %s15 = scalar_select 0, %s14, %s12
  %v16 = vstv %s10
  %17 = vst [vmem:[#allocation2] sm:$0x1] %v16
  $region1: #{maml_coat_forward.1} parent=0
    #allocation3 [shape = 'u8[778240]{0}', space=vmem, size = 0xbe000, scoped, tag = 'input window, operand 1, single buffered']
    #allocation4 [shape = 's32[1]{0}', space=sflag, size = 0x4, scoped, tag = 'scoped memory for maml_coat_forward.1']
    #allocation5 [shape = 's32[1]{0}', space=sflag, size = 0x4, scoped, tag = 'scoped memory for maml_coat_forward.1']
    #allocation6 [shape = 'u8[512]{0}', space=vmem, size = 0x400, scoped, tag = 'output window, operand 0, single buffered']
    %18 = vsyncpa [#allocation4], 0
    %19 = vsyncpa [#allocation5], 0
    // Predicated region
    $region2: #{maml_coat_forward.1} parent=1 // pred_check
      _
    $region3: #{maml_coat_forward.1} parent=1 // pred_check_branch
      %21 = sbr.rel (0) target = $region5
    $region4: #{maml_coat_forward.1} parent=1 // pred_region
      _
    $region5: #{maml_coat_forward.1} parent=1 // pred_fallthru
      _
    // Predicated region
    $region6: #{maml_coat_forward.1} parent=1 // pred_check
      _
    $region7: #{maml_coat_forward.1} parent=1 // pred_check_branch
      %23 = sbr.rel (0) target = $region9
    $region8: #{maml_coat_forward.1} parent=1 // pred_region
      %s25 = ssub.s32 24320, 24320
      %26 = vsyncadd [#allocation4], %s25
      %s27 = sshll.u32 [#allocation3], 4
      %s28 = int_to_ptr.vmem [resolvable:$true] %s27
      %33 = dma.hbm_to_vmem [thread:$0]  %s1, 24320, %s28, [#allocation4], 640, 640, 40
    $region9: #{maml_coat_forward.1} parent=1 // pred_fallthru
      _
    // Predicated region
    $region10: #{maml_coat_forward.1} parent=1 // pred_check
      _
    $region11: #{maml_coat_forward.1} parent=1 // pred_check_branch
      %35 = sbr.rel (0) target = $region13
    $region12: #{maml_coat_forward.1} parent=1 // pred_region
      _
    $region13: #{maml_coat_forward.1} parent=1 // pred_fallthru
      _
    // Predicated region
    $region14: #{maml_coat_forward.1} parent=1 // pred_check
      _
    $region15: #{maml_coat_forward.1} parent=1 // pred_check_branch
      %37 = sbr.rel (0) target = $region17
    $region16: #{maml_coat_forward.1} parent=1 // pred_region
      _
    $region17: #{maml_coat_forward.1} parent=1 // pred_fallthru
      _
    // Predicated region
    $region18: #{maml_coat_forward.1} parent=1 // pred_check
      _
    $region19: #{maml_coat_forward.1} parent=1 // pred_check_branch
      %39 = sbr.rel (0) target = $region21
    $region20: #{maml_coat_forward.1} parent=1 // pred_region
      _
    $region21: #{maml_coat_forward.1} parent=1 // pred_fallthru
      _
    // Predicated region
    $region22: #{maml_coat_forward.1} parent=1 // pred_check
      _
    $region23: #{maml_coat_forward.1} parent=1 // pred_check_branch
      %41 = sbr.rel (0) target = $region25
    $region24: #{maml_coat_forward.1} parent=1 // pred_region
      _
    $region25: #{maml_coat_forward.1} parent=1 // pred_fallthru
      _
    // Predicated region
    $region26: #{maml_coat_forward.1} parent=1 // pred_check
      _
    $region27: #{maml_coat_forward.1} parent=1 // pred_check_branch
      %43 = sbr.rel (0) target = $region29
    $region28: #{maml_coat_forward.1} parent=1 // pred_region
      _
    $region29: #{maml_coat_forward.1} parent=1 // pred_fallthru
      _
    // Predicated region
    $region30: #{maml_coat_forward.1} parent=1 // pred_check
      _
    $region31: #{maml_coat_forward.1} parent=1 // pred_check_branch
      %45 = sbr.rel (0) target = $region33
    $region32: #{maml_coat_forward.1} parent=1 // pred_region
      _
    $region33: #{maml_coat_forward.1} parent=1 // pred_fallthru
      _
    // Predicated region
    $region34: #{maml_coat_forward.1} parent=1 // pred_check
      _
    $region35: #{maml_coat_forward.1} parent=1 // pred_check_branch
      %47 = sbr.rel (0) target = $region37
    $region36: #{maml_coat_forward.1} parent=1 // pred_region
      _
    $region37: #{maml_coat_forward.1} parent=1 // pred_fallthru
      _
    // Predicated region
    $region38: #{maml_coat_forward.1} parent=1 // pred_check
      _
    $region39: #{maml_coat_forward.1} parent=1 // pred_check_branch
      %49 = sbr.rel (0) target = $region41
    $region40: #{maml_coat_forward.1} parent=1 // pred_region
      _
    $region41: #{maml_coat_forward.1} parent=1 // pred_fallthru
      _
    // Predicated region
    $region42: #{maml_coat_forward.1} parent=1 // pred_check
      _
    $region43: #{maml_coat_forward.1} parent=1 // pred_check_branch
      %51 = sbr.rel (0) target = $region45
    $region44: #{maml_coat_forward.1} parent=1 // pred_region
      _
    $region45: #{maml_coat_forward.1} parent=1 // pred_fallthru
      _
    // Predicated region
    $region46: #{maml_coat_forward.1} parent=1 // pred_check
      _
    $region47: #{maml_coat_forward.1} parent=1 // pred_check_branch
      %53 = sbr.rel (0) target = $region49
    $region48: #{maml_coat_forward.1} parent=1 // pred_region
      %54 = dma.done [#allocation4], 24320
    $region49: #{maml_coat_forward.1} parent=1 // pred_fallthru
      _
    %v55 = vld [vmem:[%s0] sm:$0xff]
    %v56 = vld [vmem:[%s0 + $0x8] sm:$0xff]
    %v57 = vld [vmem:[%s0 + $0x10] sm:$0xff]
    %v58 = vld [vmem:[%s0 + $0x18] sm:$0xff]
    %v59 = vld [vmem:[%s0 + $0x20] sm:$0xff]
    %v60 = vld [vmem:[%s0 + $0x28] sm:$0xff]
    %v61 = vld [vmem:[%s0 + $0x30] sm:$0xff]
    %v62 = vld [vmem:[%s0 + $0x38] sm:$0xff]
    %v63 = vld [vmem:[%s0 + $0x40] sm:$0xff]
    %v64 = vld [vmem:[%s0 + $0x48] sm:$0xff]
    %v65 = vld [vmem:[%s0 + $0x50] sm:$0xff]
    %v66 = vld [vmem:[%s0 + $0x58] sm:$0xff]
    %v67 = vld [vmem:[%s0 + $0x60] sm:$0xff]
    %v68 = vld [vmem:[%s0 + $0x68] sm:$0xff]
    %v69 = vld [vmem:[%s0 + $0x70] sm:$0xff]
    %v70 = vld [vmem:[%s0 + $0x78] sm:$0xff]
    %v71 = vld [vmem:[%s0 + $0x80] sm:$0xff]
    %v72 = vld [vmem:[%s0 + $0x88] sm:$0xff]
    %v73 = vld [vmem:[%s0 + $0x90] sm:$0xff]
    %v74 = vld [vmem:[%s0 + $0x98] sm:$0xff]
    %v75 = vld [vmem:[%s0 + $0xa0] sm:$0xff]
    %v76 = vld [vmem:[%s0 + $0xa8] sm:$0xff]
    %v77 = vld [vmem:[%s0 + $0xb0] sm:$0xff]
    %v78 = vld [vmem:[%s0 + $0xb8] sm:$0xff]
    %v79 = vld [vmem:[%s0 + $0xc0] sm:$0xff]
    %v80 = vld [vmem:[%s0 + $0xc8] sm:$0xff]
    %v81 = vld [vmem:[%s0 + $0xd0] sm:$0xff]
    %v82 = vld [vmem:[%s0 + $0xd8] sm:$0xff]
    %v83 = vld [vmem:[%s0 + $0xe0] sm:$0xff]
    %v84 = vld [vmem:[%s0 + $0xe8] sm:$0xff]
    %v85 = vld [vmem:[%s0 + $0xf0] sm:$0xff]
    %v86 = vld [vmem:[%s0 + $0xf8] sm:$0xff]
    %v87 = vld [vmem:[%s0 + $0x100] sm:$0xff]
    %v88 = vld [vmem:[%s0 + $0x108] sm:$0xff]
    %v89 = vld [vmem:[%s0 + $0x110] sm:$0xff]
    %v90 = vld [vmem:[%s0 + $0x118] sm:$0xff]
    %v91 = vld [vmem:[%s0 + $0x120] sm:$0xff]
    %v92 = vld [vmem:[%s0 + $0x128] sm:$0xff]
    %v93 = vld [vmem:[%s0 + $0x130] sm:$0xff]
    %v94 = vld [vmem:[%s0 + $0x138] sm:$0xff]
    %v95 = vld [vmem:[%s0 + $0x140] sm:$0xff]
    %v96 = vld [vmem:[%s0 + $0x148] sm:$0xff]
    %v97 = vld [vmem:[%s0 + $0x150] sm:$0xff]
    %v98 = vld [vmem:[%s0 + $0x158] sm:$0xff]
    %v99 = vld [vmem:[%s0 + $0x160] sm:$0xff]
    %v100 = vld [vmem:[%s0 + $0x168] sm:$0xff]
    %v101 = vld [vmem:[%s0 + $0x170] sm:$0xff]
    %v102 = vld [vmem:[%s0 + $0x178] sm:$0xff]
    %v103 = vld [vmem:[%s0 + $0x180] sm:$0xff]
    %v104 = vld [vmem:[%s0 + $0x188] sm:$0xff]
    %v105 = vld [vmem:[%s0 + $0x190] sm:$0xff]
    %v106 = vld [vmem:[%s0 + $0x198] sm:$0xff]
    %v107 = vld [vmem:[%s0 + $0x1a0] sm:$0xff]
    %v108 = vld [vmem:[%s0 + $0x1a8] sm:$0xff]
    %v109 = vld [vmem:[%s0 + $0x1b0] sm:$0xff]
    %v110 = vld [vmem:[%s0 + $0x1b8] sm:$0xff]
    %v111 = vld [vmem:[%s0 + $0x1c0] sm:$0xff]
    %v112 = vld [vmem:[%s0 + $0x1c8] sm:$0xff]
    %v113 = vld [vmem:[%s0 + $0x1d0] sm:$0xff]
    %v114 = vld [vmem:[%s0 + $0x1d8] sm:$0xff]
    %v115 = vld [vmem:[%s0 + $0x1e0] sm:$0xff]
    %v116 = vld [vmem:[%s0 + $0x1e8] sm:$0xff]
    %v117 = vld [vmem:[%s0 + $0x1f0] sm:$0xff]
    %v118 = vld [vmem:[%s0 + $0x1f8] sm:$0xff]
    %v119 = vld [vmem:[%s0 + $0x200] sm:$0xff]
    %v120 = vld [vmem:[%s0 + $0x208] sm:$0xff]
    %v121 = vld [vmem:[%s0 + $0x210] sm:$0xff]
    %v122 = vld [vmem:[%s0 + $0x218] sm:$0xff]
    %v123 = vld [vmem:[%s0 + $0x220] sm:$0xff]
    %v124 = vld [vmem:[%s0 + $0x228] sm:$0xff]
    %v125 = vld [vmem:[%s0 + $0x230] sm:$0xff]
    %v126 = vld [vmem:[%s0 + $0x238] sm:$0xff]
    %v127 = vld [vmem:[%s0 + $0x240] sm:$0xff]
    %v128 = vld [vmem:[%s0 + $0x248] sm:$0xff]
    %v129 = vld [vmem:[%s0 + $0x250] sm:$0xff]
    %v130 = vld [vmem:[#allocation3] sm:$0xff]
    %v131 = vld [vmem:[#allocation3 + $0x8] sm:$0xff]
    %v132 = vld [vmem:[#allocation3 + $0x10] sm:$0xff]
    %v133 = vld [vmem:[#allocation3 + $0x18] sm:$0xff]
    %v134 = vld [vmem:[#allocation3 + $0x20] sm:$0xff]
    %v135 = vld [vmem:[#allocation3 + $0x28] sm:$0xff]
    %v136 = vld [vmem:[#allocation3 + $0x30] sm:$0xff]
    %v137 = vld [vmem:[#allocation3 + $0x38] sm:$0xff]
    %v138 = vld [vmem:[#allocation3 + $0x40] sm:$0xff]
    %v139 = vld [vmem:[#allocation3 + $0x48] sm:$0xff]
    %v140 = vld [vmem:[#allocation3 + $0x50] sm:$0xff]
    %v141 = vld [vmem:[#allocation3 + $0x58] sm:$0xff]
    %v142 = vld [vmem:[#allocation3 + $0x60] sm:$0xff]
    %v143 = vld [vmem:[#allocation3 + $0x68] sm:$0xff]
    %v144 = vld [vmem:[#allocation3 + $0x70] sm:$0xff]
    %v145 = vld [vmem:[#allocation3 + $0x78] sm:$0xff]
    %v146 = vld [vmem:[#allocation3 + $0x80] sm:$0xff]
    %v147 = vld [vmem:[#allocation3 + $0x88] sm:$0xff]
    %v148 = vld [vmem:[#allocation3 + $0x90] sm:$0xff]
    %v149 = vld [vmem:[#allocation3 + $0x98] sm:$0xff]
    %v150 = vld [vmem:[#allocation3 + $0xa0] sm:$0xff]
    %v151 = vld [vmem:[#allocation3 + $0xa8] sm:$0xff]
    %v152 = vld [vmem:[#allocation3 + $0xb0] sm:$0xff]
    %v153 = vld [vmem:[#allocation3 + $0xb8] sm:$0xff]
    %v154 = vld [vmem:[#allocation3 + $0xc0] sm:$0xff]
    %v155 = vld [vmem:[#allocation3 + $0xc8] sm:$0xff]
    %v156 = vld [vmem:[#allocation3 + $0xd0] sm:$0xff]
    %v157 = vld [vmem:[#allocation3 + $0xd8] sm:$0xff]
    %v158 = vld [vmem:[#allocation3 + $0xe0] sm:$0xff]
    %v159 = vld [vmem:[#allocation3 + $0xe8] sm:$0xff]
    %v160 = vld [vmem:[#allocation3 + $0xf0] sm:$0xff]
    %v161 = vld [vmem:[#allocation3 + $0xf8] sm:$0xff]
    %v162 = vld [vmem:[#allocation3 + $0x100] sm:$0xff]
    %v163 = vld [vmem:[#allocation3 + $0x108] sm:$0xff]
    %v164 = vld [vmem:[#allocation3 + $0x110] sm:$0xff]
    %v165 = vld [vmem:[#allocation3 + $0x118] sm:$0xff]
    %v166 = vld [vmem:[#allocation3 + $0x120] sm:$0xff]
    %v167 = vld [vmem:[#allocation3 + $0x128] sm:$0xff]
    %v168 = vld [vmem:[#allocation3 + $0x130] sm:$0xff]
    %v169 = vld [vmem:[#allocation3 + $0x138] sm:$0xff]
    %v170 = vld [vmem:[#allocation3 + $0x140] sm:$0xff]
    %v171 = vld [vmem:[#allocation3 + $0x148] sm:$0xff]
    %v172 = vld [vmem:[#allocation3 + $0x150] sm:$0xff]
    %v173 = vld [vmem:[#allocation3 + $0x158] sm:$0xff]
    %v174 = vld [vmem:[#allocation3 + $0x160] sm:$0xff]
    %v175 = vld [vmem:[#allocation3 + $0x168] sm:$0xff]
    %v176 = vld [vmem:[#allocation3 + $0x170] sm:$0xff]
    %v177 = vld [vmem:[#allocation3 + $0x178] sm:$0xff]
    %v178 = vld [vmem:[#allocation3 + $0x180] sm:$0xff]
    %v179 = vld [vmem:[#allocation3 + $0x188] sm:$0xff]
    %v180 = vld [vmem:[#allocation3 + $0x190] sm:$0xff]
    %v181 = vld [vmem:[#allocation3 + $0x198] sm:$0xff]
    %v182 = vld [vmem:[#allocation3 + $0x1a0] sm:$0xff]
    %v183 = vld [vmem:[#allocation3 + $0x1a8] sm:$0xff]
    %v184 = vld [vmem:[#allocation3 + $0x1b0] sm:$0xff]
    %v185 = vld [vmem:[#allocation3 + $0x1b8] sm:$0xff]
    %v186 = vld [vmem:[#allocation3 + $0x1c0] sm:$0xff]
    %v187 = vld [vmem:[#allocation3 + $0x1c8] sm:$0xff]
    %v188 = vld [vmem:[#allocation3 + $0x1d0] sm:$0xff]
    %v189 = vld [vmem:[#allocation3 + $0x1d8] sm:$0xff]
    %v190 = vld [vmem:[#allocation3 + $0x1e0] sm:$0xff]
    %v191 = vld [vmem:[#allocation3 + $0x1e8] sm:$0xff]
    %v192 = vld [vmem:[#allocation3 + $0x1f0] sm:$0xff]
    %v193 = vld [vmem:[#allocation3 + $0x1f8] sm:$0xff]
    %v194 = vld [vmem:[#allocation3 + $0x200] sm:$0xff]
    %v195 = vld [vmem:[#allocation3 + $0x208] sm:$0xff]
    %v196 = vld [vmem:[#allocation3 + $0x210] sm:$0xff]
    %v197 = vld [vmem:[#allocation3 + $0x218] sm:$0xff]
    %v198 = vld [vmem:[#allocation3 + $0x220] sm:$0xff]
    %v199 = vld [vmem:[#allocation3 + $0x228] sm:$0xff]
    %v200 = vld [vmem:[#allocation3 + $0x230] sm:$0xff]
    %v201 = vld [vmem:[#allocation3 + $0x238] sm:$0xff]
    %v202 = vld [vmem:[#allocation3 + $0x240] sm:$0xff]
    %v203 = vld [vmem:[#allocation3 + $0x248] sm:$0xff]
    %v204 = vld [vmem:[#allocation3 + $0x250] sm:$0xff]
    %v205 = vld [vmem:[#allocation3 + $0x258] sm:$0xff]
    %v206 = vld [vmem:[#allocation3 + $0x260] sm:$0xff]
    %v207 = vld [vmem:[#allocation3 + $0x268] sm:$0xff]
    %v208 = vld [vmem:[#allocation3 + $0x270] sm:$0xff]
    %v209 = vld [vmem:[#allocation3 + $0x278] sm:$0xff]
    %v210 = vld [vmem:[#allocation3 + $0x280] sm:$0xff]
    %v211 = vld [vmem:[#allocation3 + $0x288] sm:$0xff]
    %v212 = vld [vmem:[#allocation3 + $0x290] sm:$0xff]
    %v213 = vld [vmem:[#allocation3 + $0x298] sm:$0xff]
    %v214 = vld [vmem:[#allocation3 + $0x2a0] sm:$0xff]
    %v215 = vld [vmem:[#allocation3 + $0x2a8] sm:$0xff]
    %v216 = vld [vmem:[#allocation3 + $0x2b0] sm:$0xff]
    %v217 = vld [vmem:[#allocation3 + $0x2b8] sm:$0xff]
    %v218 = vld [vmem:[#allocation3 + $0x2c0] sm:$0xff]
    %v219 = vld [vmem:[#allocation3 + $0x2c8] sm:$0xff]
    %v220 = vld [vmem:[#allocation3 + $0x2d0] sm:$0xff]
    %v221 = vld [vmem:[#allocation3 + $0x2d8] sm:$0xff]
    %v222 = vld [vmem:[#allocation3 + $0x2e0] sm:$0xff]
    %v223 = vld [vmem:[#allocation3 + $0x2e8] sm:$0xff]
    %v224 = vld [vmem:[#allocation3 + $0x2f0] sm:$0xff]
    %v225 = vld [vmem:[#allocation3 + $0x2f8] sm:$0xff]
    %v226 = vld [vmem:[#allocation3 + $0x300] sm:$0xff]
    %v227 = vld [vmem:[#allocation3 + $0x308] sm:$0xff]
    %v228 = vld [vmem:[#allocation3 + $0x310] sm:$0xff]
    %v229 = vld [vmem:[#allocation3 + $0x318] sm:$0xff]
    %v230 = vld [vmem:[#allocation3 + $0x320] sm:$0xff]
    %v231 = vld [vmem:[#allocation3 + $0x328] sm:$0xff]
    %v232 = vld [vmem:[#allocation3 + $0x330] sm:$0xff]
    %v233 = vld [vmem:[#allocation3 + $0x338] sm:$0xff]
    %v234 = vld [vmem:[#allocation3 + $0x340] sm:$0xff]
    %v235 = vld [vmem:[#allocation3 + $0x348] sm:$0xff]
    %v236 = vld [vmem:[#allocation3 + $0x350] sm:$0xff]
    %v237 = vld [vmem:[#allocation3 + $0x358] sm:$0xff]
    %v238 = vld [vmem:[#allocation3 + $0x360] sm:$0xff]
    %v239 = vld [vmem:[#allocation3 + $0x368] sm:$0xff]
    %v240 = vld [vmem:[#allocation3 + $0x370] sm:$0xff]
    %v241 = vld [vmem:[#allocation3 + $0x378] sm:$0xff]
    %v242 = vld [vmem:[#allocation3 + $0x380] sm:$0xff]
    %v243 = vld [vmem:[#allocation3 + $0x388] sm:$0xff]
    %v244 = vld [vmem:[#allocation3 + $0x390] sm:$0xff]
    %v245 = vld [vmem:[#allocation3 + $0x398] sm:$0xff]
    %v246 = vld [vmem:[#allocation3 + $0x3a0] sm:$0xff]
    %v247 = vld [vmem:[#allocation3 + $0x3a8] sm:$0xff]
    %v248 = vld [vmem:[#allocation3 + $0x3b0] sm:$0xff]
    %v249 = vld [vmem:[#allocation3 + $0x3b8] sm:$0xff]
    %v250 = vld [vmem:[#allocation3 + $0x3c0] sm:$0xff]
    %v251 = vld [vmem:[#allocation3 + $0x3c8] sm:$0xff]
    %v252 = vld [vmem:[#allocation3 + $0x3d0] sm:$0xff]
    %v253 = vld [vmem:[#allocation3 + $0x3d8] sm:$0xff]
    %v254 = vld [vmem:[#allocation3 + $0x3e0] sm:$0xff]
    %v255 = vld [vmem:[#allocation3 + $0x3e8] sm:$0xff]
    %v256 = vld [vmem:[#allocation3 + $0x3f0] sm:$0xff]
    %v257 = vld [vmem:[#allocation3 + $0x3f8] sm:$0xff]
    %v258 = vld [vmem:[#allocation3 + $0x400] sm:$0xff]
    %v259 = vld [vmem:[#allocation3 + $0x408] sm:$0xff]
    %v260 = vld [vmem:[#allocation3 + $0x410] sm:$0xff]
    %v261 = vld [vmem:[#allocation3 + $0x418] sm:$0xff]
    %v262 = vld [vmem:[#allocation3 + $0x420] sm:$0xff]
    %v263 = vld [vmem:[#allocation3 + $0x428] sm:$0xff]
    %v264 = vld [vmem:[#allocation3 + $0x430] sm:$0xff]
    %v265 = vld [vmem:[#allocation3 + $0x438] sm:$0xff]
    %v266 = vld [vmem:[#allocation3 + $0x440] sm:$0xff]
    %v267 = vld [vmem:[#allocation3 + $0x448] sm:$0xff]
    %v268 = vld [vmem:[#allocation3 + $0x450] sm:$0xff]
    %v269 = vld [vmem:[#allocation3 + $0x458] sm:$0xff]
    %v270 = vld [vmem:[#allocation3 + $0x460] sm:$0xff]
    %v271 = vld [vmem:[#allocation3 + $0x468] sm:$0xff]
    %v272 = vld [vmem:[#allocation3 + $0x470] sm:$0xff]
    %v273 = vld [vmem:[#allocation3 + $0x478] sm:$0xff]
    %v274 = vld [vmem:[#allocation3 + $0x480] sm:$0xff]
    %v275 = vld [vmem:[#allocation3 + $0x488] sm:$0xff]
    %v276 = vld [vmem:[#allocation3 + $0x490] sm:$0xff]
    %v277 = vld [vmem:[#allocation3 + $0x498] sm:$0xff]
    %v278 = vld [vmem:[#allocation3 + $0x4a0] sm:$0xff]
    %v279 = vld [vmem:[#allocation3 + $0x4a8] sm:$0xff]
    %v280 = vld [vmem:[#allocation3 + $0x4b0] sm:$0xff]
    %v281 = vld [vmem:[#allocation3 + $0x4b8] sm:$0xff]
    %v282 = vld [vmem:[#allocation3 + $0x4c0] sm:$0xff]
    %v283 = vld [vmem:[#allocation3 + $0x4c8] sm:$0xff]
    %v284 = vld [vmem:[#allocation3 + $0x4d0] sm:$0xff]
    %v285 = vld [vmem:[#allocation3 + $0x4d8] sm:$0xff]
    %v286 = vld [vmem:[#allocation3 + $0x4e0] sm:$0xff]
    %v287 = vld [vmem:[#allocation3 + $0x4e8] sm:$0xff]
    %v288 = vld [vmem:[#allocation3 + $0x4f0] sm:$0xff]
    %v289 = vld [vmem:[#allocation3 + $0x4f8] sm:$0xff]
    %v290 = vld [vmem:[#allocation3 + $0x500] sm:$0xff]
    %v291 = vld [vmem:[#allocation3 + $0x508] sm:$0xff]
    %v292 = vld [vmem:[#allocation3 + $0x510] sm:$0xff]
    %v293 = vld [vmem:[#allocation3 + $0x518] sm:$0xff]
    %v294 = vld [vmem:[#allocation3 + $0x520] sm:$0xff]
    %v295 = vld [vmem:[#allocation3 + $0x528] sm:$0xff]
    %v296 = vld [vmem:[#allocation3 + $0x530] sm:$0xff]
    %v297 = vld [vmem:[#allocation3 + $0x538] sm:$0xff]
    %v298 = vld [vmem:[#allocation3 + $0x540] sm:$0xff]
    %v299 = vld [vmem:[#allocation3 + $0x548] sm:$0xff]
    %v300 = vld [vmem:[#allocation3 + $0x550] sm:$0xff]
    %v301 = vld [vmem:[#allocation3 + $0x558] sm:$0xff]
    %v302 = vld [vmem:[#allocation3 + $0x560] sm:$0xff]
    %v303 = vld [vmem:[#allocation3 + $0x568] sm:$0xff]
    %v304 = vld [vmem:[#allocation3 + $0x570] sm:$0xff]
    %v305 = vld [vmem:[#allocation3 + $0x578] sm:$0xff]
    %v306 = vld [vmem:[#allocation3 + $0x580] sm:$0xff]
    %v307 = vld [vmem:[#allocation3 + $0x588] sm:$0xff]
    %v308 = vld [vmem:[#allocation3 + $0x590] sm:$0xff]
    %v309 = vld [vmem:[#allocation3 + $0x598] sm:$0xff]
    %v310 = vld [vmem:[#allocation3 + $0x5a0] sm:$0xff]
    %v311 = vld [vmem:[#allocation3 + $0x5a8] sm:$0xff]
    %v312 = vld [vmem:[#allocation3 + $0x5b0] sm:$0xff]
    %v313 = vld [vmem:[#allocation3 + $0x5b8] sm:$0xff]
    %v314 = vld [vmem:[#allocation3 + $0x5c0] sm:$0xff]
    %v315 = vld [vmem:[#allocation3 + $0x5c8] sm:$0xf]
    %v316 = vld [vmem:[#allocation3 + $0x5d0] sm:$0xf]
    %v317 = vld [vmem:[#allocation3 + $0x5d8] sm:$0xf]
    %v318 = vld [vmem:[#allocation3 + $0x5e0] sm:$0xf]
    %v319 = vld [vmem:[#allocation3 + $0x5e8] sm:$0xf]
    %v320 = vld [vmem:[%s2] sm:$0xff]
    %v321 = vld [vmem:[%s2 + $0x8] sm:$0xff]
    %v322 = vld [vmem:[%s2 + $0x10] sm:$0xff]
    %v323 = vld [vmem:[%s2 + $0x18] sm:$0xff]
    %v324 = vld [vmem:[%s2 + $0x20] sm:$0xff]
    %v325 = vld [vmem:[%s2 + $0x28] sm:$0xff]
    %v326 = vld [vmem:[%s2 + $0x30] sm:$0xff]
    %v327 = vld [vmem:[%s2 + $0x38] sm:$0xff]
    %v328 = vld [vmem:[%s2 + $0x40] sm:$0xff]
    %v329 = vld [vmem:[%s2 + $0x48] sm:$0xff]
    %v330 = vld [vmem:[%s2 + $0x50] sm:$0xff]
    %v331 = vld [vmem:[%s2 + $0x58] sm:$0xff]
    %v332 = vld [vmem:[%s2 + $0x60] sm:$0xff]
    %v333 = vld [vmem:[%s2 + $0x68] sm:$0xff]
    %v334 = vld [vmem:[%s2 + $0x70] sm:$0xff]
    %v335 = vld [vmem:[%s2 + $0x78] sm:$0xff]
    %v336 = vld [vmem:[%s2 + $0x80] sm:$0xff]
    %v337 = vld [vmem:[%s2 + $0x88] sm:$0xff]
    %v338 = vld [vmem:[%s2 + $0x90] sm:$0xff]
    %v339 = vld [vmem:[%s2 + $0x98] sm:$0xff]
    %v340 = vld [vmem:[%s2 + $0xa0] sm:$0xff]
    %v341 = vld [vmem:[%s2 + $0xa8] sm:$0xff]
    %v342 = vld [vmem:[%s2 + $0xb0] sm:$0xff]
    %v343 = vld [vmem:[%s2 + $0xb8] sm:$0xff]
    %v344 = vld [vmem:[%s2 + $0xc0] sm:$0xff]
    %v345 = vld [vmem:[%s2 + $0xc8] sm:$0xff]
    %v346 = vld [vmem:[%s2 + $0xd0] sm:$0xff]
    %v347 = vld [vmem:[%s2 + $0xd8] sm:$0xff]
    %v348 = vld [vmem:[%s2 + $0xe0] sm:$0xff]
    %v349 = vld [vmem:[%s2 + $0xe8] sm:$0xff]
    %v350 = vld [vmem:[%s2 + $0xf0] sm:$0xff]
    %v351 = vld [vmem:[%s2 + $0xf8] sm:$0xff]
    %v352 = vld [vmem:[%s2 + $0x100] sm:$0xff]
    %v353 = vld [vmem:[%s2 + $0x108] sm:$0xff]
    %v354 = vld [vmem:[%s2 + $0x110] sm:$0xff]
    %v355 = vld [vmem:[%s2 + $0x118] sm:$0xff]
    %v356 = vld [vmem:[%s2 + $0x120] sm:$0xff]
    %v357 = vld [vmem:[%s2 + $0x128] sm:$0xf]
    %359 = vset.pattern.permute.xlu0 0
    %360 = vperm.xlu0 %359, %v320
    %v361 = vpop.permute.xlu0 %360
    %364 = vset.pattern.permute.xlu0 0
    %365 = vperm.xlu0 %364, %v321
    %v366 = vpop.permute.xlu0 %365
    %369 = vset.pattern.permute.xlu0 0
    %370 = vperm.xlu0 %369, %v322
    %v371 = vpop.permute.xlu0 %370
    %374 = vset.pattern.permute.xlu0 0
    %375 = vperm.xlu0 %374, %v323
    %v376 = vpop.permute.xlu0 %375
    %379 = vset.pattern.permute.xlu0 0
    %380 = vperm.xlu0 %379, %v324
    %v381 = vpop.permute.xlu0 %380
    %384 = vset.pattern.permute.xlu0 0
    %385 = vperm.xlu0 %384, %v325
    %v386 = vpop.permute.xlu0 %385
    %389 = vset.pattern.permute.xlu0 0
    %390 = vperm.xlu0 %389, %v326
    %v391 = vpop.permute.xlu0 %390
    %394 = vset.pattern.permute.xlu0 0
    %395 = vperm.xlu0 %394, %v327
    %v396 = vpop.permute.xlu0 %395
    %399 = vset.pattern.permute.xlu0 0
    %400 = vperm.xlu0 %399, %v328
    %v401 = vpop.permute.xlu0 %400
    %404 = vset.pattern.permute.xlu0 0
    %405 = vperm.xlu0 %404, %v329
    %v406 = vpop.permute.xlu0 %405
    %409 = vset.pattern.permute.xlu0 0
    %410 = vperm.xlu0 %409, %v330
    %v411 = vpop.permute.xlu0 %410
    %414 = vset.pattern.permute.xlu0 0
    %415 = vperm.xlu0 %414, %v331
    %v416 = vpop.permute.xlu0 %415
    %419 = vset.pattern.permute.xlu0 0
    %420 = vperm.xlu0 %419, %v332
    %v421 = vpop.permute.xlu0 %420
    %424 = vset.pattern.permute.xlu0 0
    %425 = vperm.xlu0 %424, %v333
    %v426 = vpop.permute.xlu0 %425
    %429 = vset.pattern.permute.xlu0 0
    %430 = vperm.xlu0 %429, %v334
    %v431 = vpop.permute.xlu0 %430
    %434 = vset.pattern.permute.xlu0 0
    %435 = vperm.xlu0 %434, %v335
    %v436 = vpop.permute.xlu0 %435
    %439 = vset.pattern.permute.xlu0 0
    %440 = vperm.xlu0 %439, %v336
    %v441 = vpop.permute.xlu0 %440
    %444 = vset.pattern.permute.xlu0 0
    %445 = vperm.xlu0 %444, %v337
    %v446 = vpop.permute.xlu0 %445
    %449 = vset.pattern.permute.xlu0 0
    %450 = vperm.xlu0 %449, %v338
    %v451 = vpop.permute.xlu0 %450
    %454 = vset.pattern.permute.xlu0 0
    %455 = vperm.xlu0 %454, %v339
    %v456 = vpop.permute.xlu0 %455
    %459 = vset.pattern.permute.xlu0 0
    %460 = vperm.xlu0 %459, %v340
    %v461 = vpop.permute.xlu0 %460
    %464 = vset.pattern.permute.xlu0 0
    %465 = vperm.xlu0 %464, %v341
    %v466 = vpop.permute.xlu0 %465
    %469 = vset.pattern.permute.xlu0 0
    %470 = vperm.xlu0 %469, %v342
    %v471 = vpop.permute.xlu0 %470
    %474 = vset.pattern.permute.xlu0 0
    %475 = vperm.xlu0 %474, %v343
    %v476 = vpop.permute.xlu0 %475
    %479 = vset.pattern.permute.xlu0 0
    %480 = vperm.xlu0 %479, %v344
    %v481 = vpop.permute.xlu0 %480
    %484 = vset.pattern.permute.xlu0 0
    %485 = vperm.xlu0 %484, %v345
    %v486 = vpop.permute.xlu0 %485
    %489 = vset.pattern.permute.xlu0 0
    %490 = vperm.xlu0 %489, %v346
    %v491 = vpop.permute.xlu0 %490
    %494 = vset.pattern.permute.xlu0 0
    %495 = vperm.xlu0 %494, %v347
    %v496 = vpop.permute.xlu0 %495
    %499 = vset.pattern.permute.xlu0 0
    %500 = vperm.xlu0 %499, %v348
    %v501 = vpop.permute.xlu0 %500
    %504 = vset.pattern.permute.xlu0 0
    %505 = vperm.xlu0 %504, %v349
    %v506 = vpop.permute.xlu0 %505
    %509 = vset.pattern.permute.xlu0 0
    %510 = vperm.xlu0 %509, %v350
    %v511 = vpop.permute.xlu0 %510
    %514 = vset.pattern.permute.xlu0 0
    %515 = vperm.xlu0 %514, %v351
    %v516 = vpop.permute.xlu0 %515
    %519 = vset.pattern.permute.xlu0 0
    %520 = vperm.xlu0 %519, %v352
    %v521 = vpop.permute.xlu0 %520
    %524 = vset.pattern.permute.xlu0 0
    %525 = vperm.xlu0 %524, %v353
    %v526 = vpop.permute.xlu0 %525
    %529 = vset.pattern.permute.xlu0 0
    %530 = vperm.xlu0 %529, %v354
    %v531 = vpop.permute.xlu0 %530
    %534 = vset.pattern.permute.xlu0 0
    %535 = vperm.xlu0 %534, %v355
    %v536 = vpop.permute.xlu0 %535
    %539 = vset.pattern.permute.xlu0 0
    %540 = vperm.xlu0 %539, %v356
    %v541 = vpop.permute.xlu0 %540
    %544 = vset.pattern.permute.xlu0 0
    %545 = vperm.xlu0 %544, %v357
    %v546 = vpop.permute.xlu0 %545
    %vm548 = vcmask 719872
    %v550 = vsel %vm548, %v134, 0
    %v553 = vsel %vm548, %v139, 0
    %v556 = vsel %vm548, %v144, 0
    %v559 = vsel %vm548, %v149, 0
    %v562 = vsel %vm548, %v154, 0
    %v565 = vsel %vm548, %v159, 0
    %v568 = vsel %vm548, %v164, 0
    %v571 = vsel %vm548, %v169, 0
    %v574 = vsel %vm548, %v174, 0
    %v577 = vsel %vm548, %v179, 0
    %v580 = vsel %vm548, %v184, 0
    %v583 = vsel %vm548, %v189, 0
    %v586 = vsel %vm548, %v194, 0
    %v589 = vsel %vm548, %v199, 0
    %v592 = vsel %vm548, %v204, 0
    %v595 = vsel %vm548, %v209, 0
    %v598 = vsel %vm548, %v214, 0
    %v601 = vsel %vm548, %v219, 0
    %v604 = vsel %vm548, %v224, 0
    %v607 = vsel %vm548, %v229, 0
    %v610 = vsel %vm548, %v234, 0
    %v613 = vsel %vm548, %v239, 0
    %v616 = vsel %vm548, %v244, 0
    %v619 = vsel %vm548, %v249, 0
    %v622 = vsel %vm548, %v254, 0
    %v625 = vsel %vm548, %v259, 0
    %v628 = vsel %vm548, %v264, 0
    %v631 = vsel %vm548, %v269, 0
    %v634 = vsel %vm548, %v274, 0
    %v637 = vsel %vm548, %v279, 0
    %v640 = vsel %vm548, %v284, 0
    %v643 = vsel %vm548, %v289, 0
    %v646 = vsel %vm548, %v294, 0
    %v649 = vsel %vm548, %v299, 0
    %v652 = vsel %vm548, %v304, 0
    %v655 = vsel %vm548, %v309, 0
    %v658 = vsel %vm548, %v314, 0
    %v661 = vsel %vm548, %v319, 0
    %663 = vmatprep.subr.mxu0 0.0
    %664 = vmatpush1.msra.mxu0 %v70
    %665 = vmatprep.subr.mxu0 0.0
    %666 = vmatpush1.msra.mxu0 %v69
    %667 = vmatprep.subr.mxu0 0.0
    %668 = vmatpush1.msra.mxu0 %v68
    %669 = vmatprep.subr.mxu0 0.0
    %670 = vmatpush1.msra.mxu0 %v67
    %671 = vmatprep.subr.mxu0 0.0
    %672 = vmatpush1.msra.mxu0 %v66
    %673 = vmatprep.subr.mxu0 0.0
    %674 = vmatpush1.msra.mxu0 %v65
    %675 = vmatprep.subr.mxu0 0.0
    %676 = vmatpush1.msra.mxu0 %v64
    %677 = vmatprep.subr.mxu0 0.0
    %678 = vmatpush1.msra.mxu0 %v63
    %679 = vmatprep.subr.mxu0 0.0
    %680 = vmatpush1.msra.mxu0 %v62
    %681 = vmatprep.subr.mxu0 0.0
    %682 = vmatpush1.msra.mxu0 %v61
    %683 = vmatprep.subr.mxu0 0.0
    %684 = vmatpush1.msra.mxu0 %v60
    %685 = vmatprep.subr.mxu0 0.0
    %686 = vmatpush1.msra.mxu0 %v59
    %687 = vmatprep.subr.mxu0 0.0
    %688 = vmatpush1.msra.mxu0 %v58
    %689 = vmatprep.subr.mxu0 0.0
    %690 = vmatpush1.msra.mxu0 %v57
    %691 = vmatprep.subr.mxu0 0.0
    %692 = vmatpush1.msra.mxu0 %v56
    %693 = vmatprep.subr.mxu0 0.0
    %694 = vmatpush1.msra.mxu0 %v55
    %695 = vmatprep.subr.mxu0 0.0
    %696 = vmatpush2.msra.mxu0 %v86
    %697 = vmatprep.subr.mxu0 0.0
    %698 = vmatpush2.msra.mxu0 %v85
    %699 = vmatprep.subr.mxu0 0.0
    %700 = vmatpush2.msra.mxu0 %v84
    %701 = vmatprep.subr.mxu0 0.0
    %702 = vmatpush2.msra.mxu0 %v83
    %703 = vmatprep.subr.mxu0 0.0
    %704 = vmatpush2.msra.mxu0 %v82
    %705 = vmatprep.subr.mxu0 0.0
    %706 = vmatpush2.msra.mxu0 %v81
    %707 = vmatprep.subr.mxu0 0.0
    %708 = vmatpush2.msra.mxu0 %v80
    %709 = vmatprep.subr.mxu0 0.0
    %710 = vmatpush2.msra.mxu0 %v79
    %711 = vmatprep.subr.mxu0 0.0
    %712 = vmatpush2.msra.mxu0 %v78
    %713 = vmatprep.subr.mxu0 0.0
    %714 = vmatpush2.msra.mxu0 %v77
    %715 = vmatprep.subr.mxu0 0.0
    %716 = vmatpush2.msra.mxu0 %v76
    %717 = vmatprep.subr.mxu0 0.0
    %718 = vmatpush2.msra.mxu0 %v75
    %719 = vmatprep.subr.mxu0 0.0
    %720 = vmatpush2.msra.mxu0 %v74
    %721 = vmatprep.subr.mxu0 0.0
    %722 = vmatpush2.msra.mxu0 %v73
    %723 = vmatprep.subr.mxu0 0.0
    %724 = vmatpush2.msra.mxu0 %v72
    %725 = vmatprep.subr.mxu0 0.0
    %726 = vmatpush2.msra.mxu0 %v71
    %727 = vmatprep.mubr.f32.mxu0 %v131
    %728 = vmatmul.mubr.f32.gmra.mxu0 %v130
    %v729 = vpop.f32.mrf.mxu0
    %v730 = vadd.f32 %v361, %v729
    %v731 = vpop.f32.mrf.mxu0
    %732 = vmatprep.mubr.f32.mxu0 %v136
    %733 = vmatmul.mubr.f32.gmra.mxu0 %v135
    %v734 = vpop.f32.mrf.mxu0
    %v735 = vadd.f32 %v366, %v734
    %v736 = vpop.f32.mrf.mxu0
    %737 = vmatprep.mubr.f32.mxu0 %v141
    %738 = vmatmul.mubr.f32.gmra.mxu0 %v140
    %v739 = vpop.f32.mrf.mxu0
    %v740 = vadd.f32 %v371, %v739
    %v741 = vpop.f32.mrf.mxu0
    %742 = vmatprep.mubr.f32.mxu0 %v146
    %743 = vmatmul.mubr.f32.gmra.mxu0 %v145
    %v744 = vpop.f32.mrf.mxu0
    %v745 = vadd.f32 %v376, %v744
    %v746 = vpop.f32.mrf.mxu0
    %747 = vmatprep.mubr.f32.mxu0 %v151
    %748 = vmatmul.mubr.f32.gmra.mxu0 %v150
    %v749 = vpop.f32.mrf.mxu0
    %v750 = vadd.f32 %v381, %v749
    %v751 = vpop.f32.mrf.mxu0
    %752 = vmatprep.mubr.f32.mxu0 %v156
    %753 = vmatmul.mubr.f32.gmra.mxu0 %v155
    %v754 = vpop.f32.mrf.mxu0
    %v755 = vadd.f32 %v386, %v754
    %v756 = vpop.f32.mrf.mxu0
    %757 = vmatprep.mubr.f32.mxu0 %v161
    %758 = vmatmul.mubr.f32.gmra.mxu0 %v160
    %v759 = vpop.f32.mrf.mxu0
    %v760 = vadd.f32 %v391, %v759
    %v761 = vpop.f32.mrf.mxu0
    %762 = vmatprep.mubr.f32.mxu0 %v166
    %763 = vmatmul.mubr.f32.gmra.mxu0 %v165
    %v764 = vpop.f32.mrf.mxu0
    %v765 = vadd.f32 %v396, %v764
    %v766 = vpop.f32.mrf.mxu0
    %767 = vmatprep.mubr.f32.mxu0 %v171
    %768 = vmatmul.mubr.f32.gmra.mxu0 %v170
    %v769 = vpop.f32.mrf.mxu0
    %v770 = vadd.f32 %v401, %v769
    %v771 = vpop.f32.mrf.mxu0
    %772 = vmatprep.mubr.f32.mxu0 %v176
    %773 = vmatmul.mubr.f32.gmra.mxu0 %v175
    %v774 = vpop.f32.mrf.mxu0
    %v775 = vadd.f32 %v406, %v774
    %v776 = vpop.f32.mrf.mxu0
    %777 = vmatprep.mubr.f32.mxu0 %v181
    %778 = vmatmul.mubr.f32.gmra.mxu0 %v180
    %v779 = vpop.f32.mrf.mxu0
    %v780 = vadd.f32 %v411, %v779
    %v781 = vpop.f32.mrf.mxu0
    %782 = vmatprep.mubr.f32.mxu0 %v186
    %783 = vmatmul.mubr.f32.gmra.mxu0 %v185
    %v784 = vpop.f32.mrf.mxu0
    %v785 = vadd.f32 %v416, %v784
    %v786 = vpop.f32.mrf.mxu0
    %787 = vmatprep.mubr.f32.mxu0 %v191
    %788 = vmatmul.mubr.f32.gmra.mxu0 %v190
    %v789 = vpop.f32.mrf.mxu0
    %v790 = vadd.f32 %v421, %v789
    %v791 = vpop.f32.mrf.mxu0
    %792 = vmatprep.mubr.f32.mxu0 %v196
    %793 = vmatmul.mubr.f32.gmra.mxu0 %v195
    %v794 = vpop.f32.mrf.mxu0
    %v795 = vadd.f32 %v426, %v794
    %v796 = vpop.f32.mrf.mxu0
    %797 = vmatprep.mubr.f32.mxu0 %v201
    %798 = vmatmul.mubr.f32.gmra.mxu0 %v200
    %v799 = vpop.f32.mrf.mxu0
    %v800 = vadd.f32 %v431, %v799
    %v801 = vpop.f32.mrf.mxu0
    %802 = vmatprep.mubr.f32.mxu0 %v206
    %803 = vmatmul.mubr.f32.gmra.mxu0 %v205
    %v804 = vpop.f32.mrf.mxu0
    %v805 = vadd.f32 %v436, %v804
    %v806 = vpop.f32.mrf.mxu0
    %807 = vmatprep.mubr.f32.mxu0 %v211
    %808 = vmatmul.mubr.f32.gmra.mxu0 %v210
    %v809 = vpop.f32.mrf.mxu0
    %v810 = vadd.f32 %v441, %v809
    %v811 = vpop.f32.mrf.mxu0
    %812 = vmatprep.mubr.f32.mxu0 %v216
    %813 = vmatmul.mubr.f32.gmra.mxu0 %v215
    %v814 = vpop.f32.mrf.mxu0
    %v815 = vadd.f32 %v446, %v814
    %v816 = vpop.f32.mrf.mxu0
    %817 = vmatprep.mubr.f32.mxu0 %v221
    %818 = vmatmul.mubr.f32.gmra.mxu0 %v220
    %v819 = vpop.f32.mrf.mxu0
    %v820 = vadd.f32 %v451, %v819
    %v821 = vpop.f32.mrf.mxu0
    %822 = vmatprep.mubr.f32.mxu0 %v226
    %823 = vmatmul.mubr.f32.gmra.mxu0 %v225
    %v824 = vpop.f32.mrf.mxu0
    %v825 = vadd.f32 %v456, %v824
    %v826 = vpop.f32.mrf.mxu0
    %827 = vmatprep.mubr.f32.mxu0 %v231
    %828 = vmatmul.mubr.f32.gmra.mxu0 %v230
    %v829 = vpop.f32.mrf.mxu0
    %v830 = vadd.f32 %v461, %v829
    %v831 = vpop.f32.mrf.mxu0
    %832 = vmatprep.mubr.f32.mxu0 %v236
    %833 = vmatmul.mubr.f32.gmra.mxu0 %v235
    %v834 = vpop.f32.mrf.mxu0
    %v835 = vadd.f32 %v466, %v834
    %v836 = vpop.f32.mrf.mxu0
    %837 = vmatprep.mubr.f32.mxu0 %v241
    %838 = vmatmul.mubr.f32.gmra.mxu0 %v240
    %v839 = vpop.f32.mrf.mxu0
    %v840 = vadd.f32 %v471, %v839
    %v841 = vpop.f32.mrf.mxu0
    %842 = vmatprep.mubr.f32.mxu0 %v246
    %843 = vmatmul.mubr.f32.gmra.mxu0 %v245
    %v844 = vpop.f32.mrf.mxu0
    %v845 = vadd.f32 %v476, %v844
    %v846 = vpop.f32.mrf.mxu0
    %847 = vmatprep.mubr.f32.mxu0 %v251
    %848 = vmatmul.mubr.f32.gmra.mxu0 %v250
    %v849 = vpop.f32.mrf.mxu0
    %v850 = vadd.f32 %v481, %v849
    %v851 = vpop.f32.mrf.mxu0
    %852 = vmatprep.mubr.f32.mxu0 %v256
    %853 = vmatmul.mubr.f32.gmra.mxu0 %v255
    %v854 = vpop.f32.mrf.mxu0
    %v855 = vadd.f32 %v486, %v854
    %v856 = vpop.f32.mrf.mxu0
    %857 = vmatprep.mubr.f32.mxu0 %v261
    %858 = vmatmul.mubr.f32.gmra.mxu0 %v260
    %v859 = vpop.f32.mrf.mxu0
    %v860 = vadd.f32 %v491, %v859
    %v861 = vpop.f32.mrf.mxu0
    %862 = vmatprep.mubr.f32.mxu0 %v266
    %863 = vmatmul.mubr.f32.gmra.mxu0 %v265
    %v864 = vpop.f32.mrf.mxu0
    %v865 = vadd.f32 %v496, %v864
    %v866 = vpop.f32.mrf.mxu0
    %867 = vmatprep.mubr.f32.mxu0 %v271
    %868 = vmatmul.mubr.f32.gmra.mxu0 %v270
    %v869 = vpop.f32.mrf.mxu0
    %v870 = vadd.f32 %v501, %v869
    %v871 = vpop.f32.mrf.mxu0
    %872 = vmatprep.mubr.f32.mxu0 %v276
    %873 = vmatmul.mubr.f32.gmra.mxu0 %v275
    %v874 = vpop.f32.mrf.mxu0
    %v875 = vadd.f32 %v506, %v874
    %v876 = vpop.f32.mrf.mxu0
    %877 = vmatprep.mubr.f32.mxu0 %v281
    %878 = vmatmul.mubr.f32.gmra.mxu0 %v280
    %v879 = vpop.f32.mrf.mxu0
    %v880 = vadd.f32 %v511, %v879
    %v881 = vpop.f32.mrf.mxu0
    %882 = vmatprep.mubr.f32.mxu0 %v286
    %883 = vmatmul.mubr.f32.gmra.mxu0 %v285
    %v884 = vpop.f32.mrf.mxu0
    %v885 = vadd.f32 %v516, %v884
    %v886 = vpop.f32.mrf.mxu0
    %887 = vmatprep.mubr.f32.mxu0 %v291
    %888 = vmatmul.mubr.f32.gmra.mxu0 %v290
    %v889 = vpop.f32.mrf.mxu0
    %v890 = vadd.f32 %v521, %v889
    %v891 = vpop.f32.mrf.mxu0
    %892 = vmatprep.mubr.f32.mxu0 %v296
    %893 = vmatmul.mubr.f32.gmra.mxu0 %v295
    %v894 = vpop.f32.mrf.mxu0
    %v895 = vadd.f32 %v526, %v894
    %v896 = vpop.f32.mrf.mxu0
    %897 = vmatprep.mubr.f32.mxu0 %v301
    %898 = vmatmul.mubr.f32.gmra.mxu0 %v300
    %v899 = vpop.f32.mrf.mxu0
    %v900 = vadd.f32 %v531, %v899
    %v901 = vpop.f32.mrf.mxu0
    %902 = vmatprep.mubr.f32.mxu0 %v306
    %903 = vmatmul.mubr.f32.gmra.mxu0 %v305
    %v904 = vpop.f32.mrf.mxu0
    %v905 = vadd.f32 %v536, %v904
    %v906 = vpop.f32.mrf.mxu0
    %907 = vmatprep.mubr.f32.mxu0 %v311
    %908 = vmatmul.mubr.f32.gmra.mxu0 %v310
    %v909 = vpop.f32.mrf.mxu0
    %v910 = vadd.f32 %v541, %v909
    %v911 = vpop.f32.mrf.mxu0
    %912 = vmatprep.mubr.f32.mxu0 %v316
    %913 = vmatmul.mubr.f32.gmra.mxu0 %v315
    %v914 = vpop.f32.mrf.mxu0
    %v915 = vadd.f32 %v546, %v914
    %v916 = vpop.f32.mrf.mxu0
    %917 = vdwg.mxu0
    %918 = vmatprep.subr.mxu0 0.0
    %919 = vmatpush1.msra.mxu0 %v102
    %920 = vmatprep.subr.mxu0 0.0
    %921 = vmatpush1.msra.mxu0 %v101
    %922 = vmatprep.subr.mxu0 0.0
    %923 = vmatpush1.msra.mxu0 %v100
    %924 = vmatprep.subr.mxu0 0.0
    %925 = vmatpush1.msra.mxu0 %v99
    %926 = vmatprep.subr.mxu0 0.0
    %927 = vmatpush1.msra.mxu0 %v98
    %928 = vmatprep.subr.mxu0 0.0
    %929 = vmatpush1.msra.mxu0 %v97
    %930 = vmatprep.subr.mxu0 0.0
    %931 = vmatpush1.msra.mxu0 %v96
    %932 = vmatprep.subr.mxu0 0.0
    %933 = vmatpush1.msra.mxu0 %v95
    %934 = vmatprep.subr.mxu0 0.0
    %935 = vmatpush1.msra.mxu0 %v94
    %936 = vmatprep.subr.mxu0 0.0
    %937 = vmatpush1.msra.mxu0 %v93
    %938 = vmatprep.subr.mxu0 0.0
    %939 = vmatpush1.msra.mxu0 %v92
    %940 = vmatprep.subr.mxu0 0.0
    %941 = vmatpush1.msra.mxu0 %v91
    %942 = vmatprep.subr.mxu0 0.0
    %943 = vmatpush1.msra.mxu0 %v90
    %944 = vmatprep.subr.mxu0 0.0
    %945 = vmatpush1.msra.mxu0 %v89
    %946 = vmatprep.subr.mxu0 0.0
    %947 = vmatpush1.msra.mxu0 %v88
    %948 = vmatprep.subr.mxu0 0.0
    %949 = vmatpush1.msra.mxu0 %v87
    %950 = vmatprep.subr.mxu0 0.0
    %951 = vmatpush2.msra.mxu0 %v118
    %952 = vmatprep.subr.mxu0 0.0
    %953 = vmatpush2.msra.mxu0 %v117
    %954 = vmatprep.subr.mxu0 0.0
    %955 = vmatpush2.msra.mxu0 %v116
    %956 = vmatprep.subr.mxu0 0.0
    %957 = vmatpush2.msra.mxu0 %v115
    %958 = vmatprep.subr.mxu0 0.0
    %959 = vmatpush2.msra.mxu0 %v114
    %960 = vmatprep.subr.mxu0 0.0
    %961 = vmatpush2.msra.mxu0 %v113
    %962 = vmatprep.subr.mxu0 0.0
    %963 = vmatpush2.msra.mxu0 %v112
    %964 = vmatprep.subr.mxu0 0.0
    %965 = vmatpush2.msra.mxu0 %v111
    %966 = vmatprep.subr.mxu0 0.0
    %967 = vmatpush2.msra.mxu0 %v110
    %968 = vmatprep.subr.mxu0 0.0
    %969 = vmatpush2.msra.mxu0 %v109
    %970 = vmatprep.subr.mxu0 0.0
    %971 = vmatpush2.msra.mxu0 %v108
    %972 = vmatprep.subr.mxu0 0.0
    %973 = vmatpush2.msra.mxu0 %v107
    %974 = vmatprep.subr.mxu0 0.0
    %975 = vmatpush2.msra.mxu0 %v106
    %976 = vmatprep.subr.mxu0 0.0
    %977 = vmatpush2.msra.mxu0 %v105
    %978 = vmatprep.subr.mxu0 0.0
    %979 = vmatpush2.msra.mxu0 %v104
    %980 = vmatprep.subr.mxu0 0.0
    %981 = vmatpush2.msra.mxu0 %v103
    %982 = vmatprep.mubr.f32.mxu0 %v133
    %983 = vmatmul.mubr.f32.gmra.mxu0 %v132
    %v984 = vpop.f32.mrf.mxu0
    %v985 = vadd.f32 %v730, %v984
    %v986 = vpop.f32.mrf.mxu0
    %987 = vmatprep.mubr.f32.mxu0 %v138
    %988 = vmatmul.mubr.f32.gmra.mxu0 %v137
    %v989 = vpop.f32.mrf.mxu0
    %v990 = vadd.f32 %v735, %v989
    %v991 = vpop.f32.mrf.mxu0
    %992 = vmatprep.mubr.f32.mxu0 %v143
    %993 = vmatmul.mubr.f32.gmra.mxu0 %v142
    %v994 = vpop.f32.mrf.mxu0
    %v995 = vadd.f32 %v740, %v994
    %v996 = vpop.f32.mrf.mxu0
    %997 = vmatprep.mubr.f32.mxu0 %v148
    %998 = vmatmul.mubr.f32.gmra.mxu0 %v147
    %v999 = vpop.f32.mrf.mxu0
    %v1000 = vadd.f32 %v745, %v999
    %v1001 = vpop.f32.mrf.mxu0
    %1002 = vmatprep.mubr.f32.mxu0 %v153
    %1003 = vmatmul.mubr.f32.gmra.mxu0 %v152
    %v1004 = vpop.f32.mrf.mxu0
    %v1005 = vadd.f32 %v750, %v1004
    %v1006 = vpop.f32.mrf.mxu0
    %1007 = vmatprep.mubr.f32.mxu0 %v158
    %1008 = vmatmul.mubr.f32.gmra.mxu0 %v157
    %v1009 = vpop.f32.mrf.mxu0
    %v1010 = vadd.f32 %v755, %v1009
    %v1011 = vpop.f32.mrf.mxu0
    %1012 = vmatprep.mubr.f32.mxu0 %v163
    %1013 = vmatmul.mubr.f32.gmra.mxu0 %v162
    %v1014 = vpop.f32.mrf.mxu0
    %v1015 = vadd.f32 %v760, %v1014
    %v1016 = vpop.f32.mrf.mxu0
    %1017 = vmatprep.mubr.f32.mxu0 %v168
    %1018 = vmatmul.mubr.f32.gmra.mxu0 %v167
    %v1019 = vpop.f32.mrf.mxu0
    %v1020 = vadd.f32 %v765, %v1019
    %v1021 = vpop.f32.mrf.mxu0
    %1022 = vmatprep.mubr.f32.mxu0 %v173
    %1023 = vmatmul.mubr.f32.gmra.mxu0 %v172
    %v1024 = vpop.f32.mrf.mxu0
    %v1025 = vadd.f32 %v770, %v1024
    %v1026 = vpop.f32.mrf.mxu0
    %1027 = vmatprep.mubr.f32.mxu0 %v178
    %1028 = vmatmul.mubr.f32.gmra.mxu0 %v177
    %v1029 = vpop.f32.mrf.mxu0
    %v1030 = vadd.f32 %v775, %v1029
    %v1031 = vpop.f32.mrf.mxu0
    %1032 = vmatprep.mubr.f32.mxu0 %v183
    %1033 = vmatmul.mubr.f32.gmra.mxu0 %v182
    %v1034 = vpop.f32.mrf.mxu0
    %v1035 = vadd.f32 %v780, %v1034
    %v1036 = vpop.f32.mrf.mxu0
    %1037 = vmatprep.mubr.f32.mxu0 %v188
    %1038 = vmatmul.mubr.f32.gmra.mxu0 %v187
    %v1039 = vpop.f32.mrf.mxu0
    %v1040 = vadd.f32 %v785, %v1039
    %v1041 = vpop.f32.mrf.mxu0
    %1042 = vmatprep.mubr.f32.mxu0 %v193
    %1043 = vmatmul.mubr.f32.gmra.mxu0 %v192
    %v1044 = vpop.f32.mrf.mxu0
    %v1045 = vadd.f32 %v790, %v1044
    %v1046 = vpop.f32.mrf.mxu0
    %1047 = vmatprep.mubr.f32.mxu0 %v198
    %1048 = vmatmul.mubr.f32.gmra.mxu0 %v197
    %v1049 = vpop.f32.mrf.mxu0
    %v1050 = vadd.f32 %v795, %v1049
    %v1051 = vpop.f32.mrf.mxu0
    %1052 = vmatprep.mubr.f32.mxu0 %v203
    %1053 = vmatmul.mubr.f32.gmra.mxu0 %v202
    %v1054 = vpop.f32.mrf.mxu0
    %v1055 = vadd.f32 %v800, %v1054
    %v1056 = vpop.f32.mrf.mxu0
    %1057 = vmatprep.mubr.f32.mxu0 %v208
    %1058 = vmatmul.mubr.f32.gmra.mxu0 %v207
    %v1059 = vpop.f32.mrf.mxu0
    %v1060 = vadd.f32 %v805, %v1059
    %v1061 = vpop.f32.mrf.mxu0
    %1062 = vmatprep.mubr.f32.mxu0 %v213
    %1063 = vmatmul.mubr.f32.gmra.mxu0 %v212
    %v1064 = vpop.f32.mrf.mxu0
    %v1065 = vadd.f32 %v810, %v1064
    %v1066 = vpop.f32.mrf.mxu0
    %1067 = vmatprep.mubr.f32.mxu0 %v218
    %1068 = vmatmul.mubr.f32.gmra.mxu0 %v217
    %v1069 = vpop.f32.mrf.mxu0
    %v1070 = vadd.f32 %v815, %v1069
    %v1071 = vpop.f32.mrf.mxu0
    %1072 = vmatprep.mubr.f32.mxu0 %v223
    %1073 = vmatmul.mubr.f32.gmra.mxu0 %v222
    %v1074 = vpop.f32.mrf.mxu0
    %v1075 = vadd.f32 %v820, %v1074
    %v1076 = vpop.f32.mrf.mxu0
    %1077 = vmatprep.mubr.f32.mxu0 %v228
    %1078 = vmatmul.mubr.f32.gmra.mxu0 %v227
    %v1079 = vpop.f32.mrf.mxu0
    %v1080 = vadd.f32 %v825, %v1079
    %v1081 = vpop.f32.mrf.mxu0
    %1082 = vmatprep.mubr.f32.mxu0 %v233
    %1083 = vmatmul.mubr.f32.gmra.mxu0 %v232
    %v1084 = vpop.f32.mrf.mxu0
    %v1085 = vadd.f32 %v830, %v1084
    %v1086 = vpop.f32.mrf.mxu0
    %1087 = vmatprep.mubr.f32.mxu0 %v238
    %1088 = vmatmul.mubr.f32.gmra.mxu0 %v237
    %v1089 = vpop.f32.mrf.mxu0
    %v1090 = vadd.f32 %v835, %v1089
    %v1091 = vpop.f32.mrf.mxu0
    %1092 = vmatprep.mubr.f32.mxu0 %v243
    %1093 = vmatmul.mubr.f32.gmra.mxu0 %v242
    %v1094 = vpop.f32.mrf.mxu0
    %v1095 = vadd.f32 %v840, %v1094
    %v1096 = vpop.f32.mrf.mxu0
    %1097 = vmatprep.mubr.f32.mxu0 %v248
    %1098 = vmatmul.mubr.f32.gmra.mxu0 %v247
    %v1099 = vpop.f32.mrf.mxu0
    %v1100 = vadd.f32 %v845, %v1099
    %v1101 = vpop.f32.mrf.mxu0
    %1102 = vmatprep.mubr.f32.mxu0 %v253
    %1103 = vmatmul.mubr.f32.gmra.mxu0 %v252
    %v1104 = vpop.f32.mrf.mxu0
    %v1105 = vadd.f32 %v850, %v1104
    %v1106 = vpop.f32.mrf.mxu0
    %1107 = vmatprep.mubr.f32.mxu0 %v258
    %1108 = vmatmul.mubr.f32.gmra.mxu0 %v257
    %v1109 = vpop.f32.mrf.mxu0
    %v1110 = vadd.f32 %v855, %v1109
    %v1111 = vpop.f32.mrf.mxu0
    %1112 = vmatprep.mubr.f32.mxu0 %v263
    %1113 = vmatmul.mubr.f32.gmra.mxu0 %v262
    %v1114 = vpop.f32.mrf.mxu0
    %v1115 = vadd.f32 %v860, %v1114
    %v1116 = vpop.f32.mrf.mxu0
    %1117 = vmatprep.mubr.f32.mxu0 %v268
    %1118 = vmatmul.mubr.f32.gmra.mxu0 %v267
    %v1119 = vpop.f32.mrf.mxu0
    %v1120 = vadd.f32 %v865, %v1119
    %v1121 = vpop.f32.mrf.mxu0
    %1122 = vmatprep.mubr.f32.mxu0 %v273
    %1123 = vmatmul.mubr.f32.gmra.mxu0 %v272
    %v1124 = vpop.f32.mrf.mxu0
    %v1125 = vadd.f32 %v870, %v1124
    %v1126 = vpop.f32.mrf.mxu0
    %1127 = vmatprep.mubr.f32.mxu0 %v278
    %1128 = vmatmul.mubr.f32.gmra.mxu0 %v277
    %v1129 = vpop.f32.mrf.mxu0
    %v1130 = vadd.f32 %v875, %v1129
    %v1131 = vpop.f32.mrf.mxu0
    %1132 = vmatprep.mubr.f32.mxu0 %v283
    %1133 = vmatmul.mubr.f32.gmra.mxu0 %v282
    %v1134 = vpop.f32.mrf.mxu0
    %v1135 = vadd.f32 %v880, %v1134
    %v1136 = vpop.f32.mrf.mxu0
    %1137 = vmatprep.mubr.f32.mxu0 %v288
    %1138 = vmatmul.mubr.f32.gmra.mxu0 %v287
    %v1139 = vpop.f32.mrf.mxu0
    %v1140 = vadd.f32 %v885, %v1139
    %v1141 = vpop.f32.mrf.mxu0
    %1142 = vmatprep.mubr.f32.mxu0 %v293
    %1143 = vmatmul.mubr.f32.gmra.mxu0 %v292
    %v1144 = vpop.f32.mrf.mxu0
    %v1145 = vadd.f32 %v890, %v1144
    %v1146 = vpop.f32.mrf.mxu0
    %1147 = vmatprep.mubr.f32.mxu0 %v298
    %1148 = vmatmul.mubr.f32.gmra.mxu0 %v297
    %v1149 = vpop.f32.mrf.mxu0
    %v1150 = vadd.f32 %v895, %v1149
    %v1151 = vpop.f32.mrf.mxu0
    %1152 = vmatprep.mubr.f32.mxu0 %v303
    %1153 = vmatmul.mubr.f32.gmra.mxu0 %v302
    %v1154 = vpop.f32.mrf.mxu0
    %v1155 = vadd.f32 %v900, %v1154
    %v1156 = vpop.f32.mrf.mxu0
    %1157 = vmatprep.mubr.f32.mxu0 %v308
    %1158 = vmatmul.mubr.f32.gmra.mxu0 %v307
    %v1159 = vpop.f32.mrf.mxu0
    %v1160 = vadd.f32 %v905, %v1159
    %v1161 = vpop.f32.mrf.mxu0
    %1162 = vmatprep.mubr.f32.mxu0 %v313
    %1163 = vmatmul.mubr.f32.gmra.mxu0 %v312
    %v1164 = vpop.f32.mrf.mxu0
    %v1165 = vadd.f32 %v910, %v1164
    %v1166 = vpop.f32.mrf.mxu0
    %1167 = vmatprep.mubr.f32.mxu0 %v318
    %1168 = vmatmul.mubr.f32.gmra.mxu0 %v317
    %v1169 = vpop.f32.mrf.mxu0
    %v1170 = vadd.f32 %v915, %v1169
    %v1171 = vpop.f32.mrf.mxu0
    %1172 = vdwg.mxu0
    %1173 = vmatprep.subr.mxu0 0.0
    %1174 = vmatpush1.msra.mxu0 0.0
    %1175 = vmatprep.subr.mxu0 0.0
    %1176 = vmatpush1.msra.mxu0 0.0
    %1177 = vmatprep.subr.mxu0 0.0
    %1178 = vmatpush1.msra.mxu0 0.0
    %1179 = vmatprep.subr.mxu0 0.0
    %1180 = vmatpush1.msra.mxu0 0.0
    %1181 = vmatprep.subr.mxu0 0.0
    %1182 = vmatpush1.msra.mxu0 0.0
    %1183 = vmatprep.subr.mxu0 0.0
    %1184 = vmatpush1.msra.mxu0 %v129
    %1185 = vmatprep.subr.mxu0 0.0
    %1186 = vmatpush1.msra.mxu0 %v128
    %1187 = vmatprep.subr.mxu0 0.0
    %1188 = vmatpush1.msra.mxu0 %v127
    %1189 = vmatprep.subr.mxu0 0.0
    %1190 = vmatpush1.msra.mxu0 %v126
    %1191 = vmatprep.subr.mxu0 0.0
    %1192 = vmatpush1.msra.mxu0 %v125
    %1193 = vmatprep.subr.mxu0 0.0
    %1194 = vmatpush1.msra.mxu0 %v124
    %1195 = vmatprep.subr.mxu0 0.0
    %1196 = vmatpush1.msra.mxu0 %v123
    %1197 = vmatprep.subr.mxu0 0.0
    %1198 = vmatpush1.msra.mxu0 %v122
    %1199 = vmatprep.subr.mxu0 0.0
    %1200 = vmatpush1.msra.mxu0 %v121
    %1201 = vmatprep.subr.mxu0 0.0
    %1202 = vmatpush1.msra.mxu0 %v120
    %1203 = vmatprep.subr.mxu0 0.0
    %1204 = vmatpush1.msra.mxu0 %v119
    %1205 = vmatprep.subr.mxu0 0.0
    %1206 = vmatpush2.msra.mxu0 0.0
    %1207 = vmatprep.subr.mxu0 0.0
    %1208 = vmatpush2.msra.mxu0 0.0
    %1209 = vmatprep.subr.mxu0 0.0
    %1210 = vmatpush2.msra.mxu0 0.0
    %1211 = vmatprep.subr.mxu0 0.0
    %1212 = vmatpush2.msra.mxu0 0.0
    %1213 = vmatprep.subr.mxu0 0.0
    %1214 = vmatpush2.msra.mxu0 0.0
    %1215 = vmatprep.subr.mxu0 0.0
    %1216 = vmatpush2.msra.mxu0 0.0
    %1217 = vmatprep.subr.mxu0 0.0
    %1218 = vmatpush2.msra.mxu0 0.0
    %1219 = vmatprep.subr.mxu0 0.0
    %1220 = vmatpush2.msra.mxu0 0.0
    %1221 = vmatprep.subr.mxu0 0.0
    %1222 = vmatpush2.msra.mxu0 0.0
    %1223 = vmatprep.subr.mxu0 0.0
    %1224 = vmatpush2.msra.mxu0 0.0
    %1225 = vmatprep.subr.mxu0 0.0
    %1226 = vmatpush2.msra.mxu0 0.0
    %1227 = vmatprep.subr.mxu0 0.0
    %1228 = vmatpush2.msra.mxu0 0.0
    %1229 = vmatprep.subr.mxu0 0.0
    %1230 = vmatpush2.msra.mxu0 0.0
    %1231 = vmatprep.subr.mxu0 0.0
    %1232 = vmatpush2.msra.mxu0 0.0
    %1233 = vmatprep.subr.mxu0 0.0
    %1234 = vmatpush2.msra.mxu0 0.0
    %1235 = vmatprep.subr.mxu0 0.0
    %1236 = vmatpush2.msra.mxu0 0.0
    %1237 = vmatprep.mubr.f32.mxu0 0.0
    %1238 = vmatmul.mubr.f32.gmra.mxu0 %v550
    %v1239 = vpop.f32.mrf.mxu0
    %v1240 = vadd.f32 %v985, %v1239
    %v1241 = vpop.f32.mrf.mxu0
    %1242 = vmatprep.mubr.f32.mxu0 0.0
    %1243 = vmatmul.mubr.f32.gmra.mxu0 %v553
    %v1244 = vpop.f32.mrf.mxu0
    %v1245 = vadd.f32 %v990, %v1244
    %v1246 = vpop.f32.mrf.mxu0
    %1247 = vmatprep.mubr.f32.mxu0 0.0
    %1248 = vmatmul.mubr.f32.gmra.mxu0 %v556
    %v1249 = vpop.f32.mrf.mxu0
    %v1250 = vadd.f32 %v995, %v1249
    %v1251 = vpop.f32.mrf.mxu0
    %1252 = vmatprep.mubr.f32.mxu0 0.0
    %1253 = vmatmul.mubr.f32.gmra.mxu0 %v559
    %v1254 = vpop.f32.mrf.mxu0
    %v1255 = vadd.f32 %v1000, %v1254
    %v1256 = vpop.f32.mrf.mxu0
    %1257 = vmatprep.mubr.f32.mxu0 0.0
    %1258 = vmatmul.mubr.f32.gmra.mxu0 %v562
    %v1259 = vpop.f32.mrf.mxu0
    %v1260 = vadd.f32 %v1005, %v1259
    %v1261 = vpop.f32.mrf.mxu0
    %1262 = vmatprep.mubr.f32.mxu0 0.0
    %1263 = vmatmul.mubr.f32.gmra.mxu0 %v565
    %v1264 = vpop.f32.mrf.mxu0
    %v1265 = vadd.f32 %v1010, %v1264
    %v1266 = vpop.f32.mrf.mxu0
    %1267 = vmatprep.mubr.f32.mxu0 0.0
    %1268 = vmatmul.mubr.f32.gmra.mxu0 %v568
    %v1269 = vpop.f32.mrf.mxu0
    %v1270 = vadd.f32 %v1015, %v1269
    %v1271 = vpop.f32.mrf.mxu0
    %1272 = vmatprep.mubr.f32.mxu0 0.0
    %1273 = vmatmul.mubr.f32.gmra.mxu0 %v571
    %v1274 = vpop.f32.mrf.mxu0
    %v1275 = vadd.f32 %v1020, %v1274
    %v1276 = vpop.f32.mrf.mxu0
    %1277 = vmatprep.mubr.f32.mxu0 0.0
    %1278 = vmatmul.mubr.f32.gmra.mxu0 %v574
    %v1279 = vpop.f32.mrf.mxu0
    %v1280 = vadd.f32 %v1025, %v1279
    %v1281 = vpop.f32.mrf.mxu0
    %1282 = vmatprep.mubr.f32.mxu0 0.0
    %1283 = vmatmul.mubr.f32.gmra.mxu0 %v577
    %v1284 = vpop.f32.mrf.mxu0
    %v1285 = vadd.f32 %v1030, %v1284
    %v1286 = vpop.f32.mrf.mxu0
    %1287 = vmatprep.mubr.f32.mxu0 0.0
    %1288 = vmatmul.mubr.f32.gmra.mxu0 %v580
    %v1289 = vpop.f32.mrf.mxu0
    %v1290 = vadd.f32 %v1035, %v1289
    %v1291 = vpop.f32.mrf.mxu0
    %1292 = vmatprep.mubr.f32.mxu0 0.0
    %1293 = vmatmul.mubr.f32.gmra.mxu0 %v583
    %v1294 = vpop.f32.mrf.mxu0
    %v1295 = vadd.f32 %v1040, %v1294
    %v1296 = vpop.f32.mrf.mxu0
    %1297 = vmatprep.mubr.f32.mxu0 0.0
    %1298 = vmatmul.mubr.f32.gmra.mxu0 %v586
    %v1299 = vpop.f32.mrf.mxu0
    %v1300 = vadd.f32 %v1045, %v1299
    %v1301 = vpop.f32.mrf.mxu0
    %1302 = vmatprep.mubr.f32.mxu0 0.0
    %1303 = vmatmul.mubr.f32.gmra.mxu0 %v589
    %v1304 = vpop.f32.mrf.mxu0
    %v1305 = vadd.f32 %v1050, %v1304
    %v1306 = vpop.f32.mrf.mxu0
    %1307 = vmatprep.mubr.f32.mxu0 0.0
    %1308 = vmatmul.mubr.f32.gmra.mxu0 %v592
    %v1309 = vpop.f32.mrf.mxu0
    %v1310 = vadd.f32 %v1055, %v1309
    %v1311 = vpop.f32.mrf.mxu0
    %1312 = vmatprep.mubr.f32.mxu0 0.0
    %1313 = vmatmul.mubr.f32.gmra.mxu0 %v595
    %v1314 = vpop.f32.mrf.mxu0
    %v1315 = vadd.f32 %v1060, %v1314
    %v1316 = vpop.f32.mrf.mxu0
    %1317 = vmatprep.mubr.f32.mxu0 0.0
    %1318 = vmatmul.mubr.f32.gmra.mxu0 %v598
    %v1319 = vpop.f32.mrf.mxu0
    %v1320 = vadd.f32 %v1065, %v1319
    %v1321 = vpop.f32.mrf.mxu0
    %1322 = vmatprep.mubr.f32.mxu0 0.0
    %1323 = vmatmul.mubr.f32.gmra.mxu0 %v601
    %v1324 = vpop.f32.mrf.mxu0
    %v1325 = vadd.f32 %v1070, %v1324
    %v1326 = vpop.f32.mrf.mxu0
    %1327 = vmatprep.mubr.f32.mxu0 0.0
    %1328 = vmatmul.mubr.f32.gmra.mxu0 %v604
    %v1329 = vpop.f32.mrf.mxu0
    %v1330 = vadd.f32 %v1075, %v1329
    %v1331 = vpop.f32.mrf.mxu0
    %1332 = vmatprep.mubr.f32.mxu0 0.0
    %1333 = vmatmul.mubr.f32.gmra.mxu0 %v607
    %v1334 = vpop.f32.mrf.mxu0
    %v1335 = vadd.f32 %v1080, %v1334
    %v1336 = vpop.f32.mrf.mxu0
    %1337 = vmatprep.mubr.f32.mxu0 0.0
    %1338 = vmatmul.mubr.f32.gmra.mxu0 %v610
    %v1339 = vpop.f32.mrf.mxu0
    %v1340 = vadd.f32 %v1085, %v1339
    %v1341 = vpop.f32.mrf.mxu0
    %1342 = vmatprep.mubr.f32.mxu0 0.0
    %1343 = vmatmul.mubr.f32.gmra.mxu0 %v613
    %v1344 = vpop.f32.mrf.mxu0
    %v1345 = vadd.f32 %v1090, %v1344
    %v1346 = vpop.f32.mrf.mxu0
    %1347 = vmatprep.mubr.f32.mxu0 0.0
    %1348 = vmatmul.mubr.f32.gmra.mxu0 %v616
    %v1349 = vpop.f32.mrf.mxu0
    %v1350 = vadd.f32 %v1095, %v1349
    %v1351 = vpop.f32.mrf.mxu0
    %1352 = vmatprep.mubr.f32.mxu0 0.0
    %1353 = vmatmul.mubr.f32.gmra.mxu0 %v619
    %v1354 = vpop.f32.mrf.mxu0
    %v1355 = vadd.f32 %v1100, %v1354
    %v1356 = vpop.f32.mrf.mxu0
    %1357 = vmatprep.mubr.f32.mxu0 0.0
    %1358 = vmatmul.mubr.f32.gmra.mxu0 %v622
    %v1359 = vpop.f32.mrf.mxu0
    %v1360 = vadd.f32 %v1105, %v1359
    %v1361 = vpop.f32.mrf.mxu0
    %1362 = vmatprep.mubr.f32.mxu0 0.0
    %1363 = vmatmul.mubr.f32.gmra.mxu0 %v625
    %v1364 = vpop.f32.mrf.mxu0
    %v1365 = vadd.f32 %v1110, %v1364
    %v1366 = vpop.f32.mrf.mxu0
    %1367 = vmatprep.mubr.f32.mxu0 0.0
    %1368 = vmatmul.mubr.f32.gmra.mxu0 %v628
    %v1369 = vpop.f32.mrf.mxu0
    %v1370 = vadd.f32 %v1115, %v1369
    %v1371 = vpop.f32.mrf.mxu0
    %1372 = vmatprep.mubr.f32.mxu0 0.0
    %1373 = vmatmul.mubr.f32.gmra.mxu0 %v631
    %v1374 = vpop.f32.mrf.mxu0
    %v1375 = vadd.f32 %v1120, %v1374
    %v1376 = vpop.f32.mrf.mxu0
    %1377 = vmatprep.mubr.f32.mxu0 0.0
    %1378 = vmatmul.mubr.f32.gmra.mxu0 %v634
    %v1379 = vpop.f32.mrf.mxu0
    %v1380 = vadd.f32 %v1125, %v1379
    %v1381 = vpop.f32.mrf.mxu0
    %1382 = vmatprep.mubr.f32.mxu0 0.0
    %1383 = vmatmul.mubr.f32.gmra.mxu0 %v637
    %v1384 = vpop.f32.mrf.mxu0
    %v1385 = vadd.f32 %v1130, %v1384
    %v1386 = vpop.f32.mrf.mxu0
    %1387 = vmatprep.mubr.f32.mxu0 0.0
    %1388 = vmatmul.mubr.f32.gmra.mxu0 %v640
    %v1389 = vpop.f32.mrf.mxu0
    %v1390 = vadd.f32 %v1135, %v1389
    %v1391 = vpop.f32.mrf.mxu0
    %1392 = vmatprep.mubr.f32.mxu0 0.0
    %1393 = vmatmul.mubr.f32.gmra.mxu0 %v643
    %v1394 = vpop.f32.mrf.mxu0
    %v1395 = vadd.f32 %v1140, %v1394
    %v1396 = vpop.f32.mrf.mxu0
    %1397 = vmatprep.mubr.f32.mxu0 0.0
    %1398 = vmatmul.mubr.f32.gmra.mxu0 %v646
    %v1399 = vpop.f32.mrf.mxu0
    %v1400 = vadd.f32 %v1145, %v1399
    %v1401 = vpop.f32.mrf.mxu0
    %1402 = vmatprep.mubr.f32.mxu0 0.0
    %1403 = vmatmul.mubr.f32.gmra.mxu0 %v649
    %v1404 = vpop.f32.mrf.mxu0
    %v1405 = vadd.f32 %v1150, %v1404
    %v1406 = vpop.f32.mrf.mxu0
    %1407 = vmatprep.mubr.f32.mxu0 0.0
    %1408 = vmatmul.mubr.f32.gmra.mxu0 %v652
    %v1409 = vpop.f32.mrf.mxu0
    %v1410 = vadd.f32 %v1155, %v1409
    %v1411 = vpop.f32.mrf.mxu0
    %1412 = vmatprep.mubr.f32.mxu0 0.0
    %1413 = vmatmul.mubr.f32.gmra.mxu0 %v655
    %v1414 = vpop.f32.mrf.mxu0
    %v1415 = vadd.f32 %v1160, %v1414
    %v1416 = vpop.f32.mrf.mxu0
    %1417 = vmatprep.mubr.f32.mxu0 0.0
    %1418 = vmatmul.mubr.f32.gmra.mxu0 %v658
    %v1419 = vpop.f32.mrf.mxu0
    %v1420 = vadd.f32 %v1165, %v1419
    %v1421 = vpop.f32.mrf.mxu0
    %1422 = vmatprep.mubr.f32.mxu0 0.0
    %1423 = vmatmul.mubr.f32.gmra.mxu0 %v661
    %v1424 = vpop.f32.mrf.mxu0
    %v1425 = vadd.f32 %v1170, %v1424
    %v1426 = vpop.f32.mrf.mxu0
    %1427 = vdwg.mxu0
    %v1428 = vmax.f32 %v1240, 0.0
    %v1429 = vmax.f32 %v1245, 0.0
    %v1430 = vmax.f32 %v1250, 0.0
    %v1431 = vmax.f32 %v1255, 0.0
    %v1432 = vmax.f32 %v1260, 0.0
    %v1433 = vmax.f32 %v1265, 0.0
    %v1434 = vmax.f32 %v1270, 0.0
    %v1435 = vmax.f32 %v1275, 0.0
    %v1436 = vmax.f32 %v1280, 0.0
    %v1437 = vmax.f32 %v1285, 0.0
    %v1438 = vmax.f32 %v1290, 0.0
    %v1439 = vmax.f32 %v1295, 0.0
    %v1440 = vmax.f32 %v1300, 0.0
    %v1441 = vmax.f32 %v1305, 0.0
    %v1442 = vmax.f32 %v1310, 0.0
    %v1443 = vmax.f32 %v1315, 0.0
    %v1444 = vmax.f32 %v1320, 0.0
    %v1445 = vmax.f32 %v1325, 0.0
    %v1446 = vmax.f32 %v1330, 0.0
    %v1447 = vmax.f32 %v1335, 0.0
    %v1448 = vmax.f32 %v1340, 0.0
    %v1449 = vmax.f32 %v1345, 0.0
    %v1450 = vmax.f32 %v1350, 0.0
    %v1451 = vmax.f32 %v1355, 0.0
    %v1452 = vmax.f32 %v1360, 0.0
    %v1453 = vmax.f32 %v1365, 0.0
    %v1454 = vmax.f32 %v1370, 0.0
    %v1455 = vmax.f32 %v1375, 0.0
    %v1456 = vmax.f32 %v1380, 0.0
    %v1457 = vmax.f32 %v1385, 0.0
    %v1458 = vmax.f32 %v1390, 0.0
    %v1459 = vmax.f32 %v1395, 0.0
    %v1460 = vmax.f32 %v1400, 0.0
    %v1461 = vmax.f32 %v1405, 0.0
    %v1462 = vmax.f32 %v1410, 0.0
    %v1463 = vmax.f32 %v1415, 0.0
    %v1464 = vmax.f32 %v1420, 0.0
    %v1465 = vmax.f32 %v1425, 0.0
    %v1466 = vld [vmem:[%s3] sm:$0xff]
    %v1467 = vld [vmem:[%s3 + $0x8] sm:$0xff]
    %v1468 = vld [vmem:[%s3 + $0x10] sm:$0xff]
    %v1469 = vld [vmem:[%s3 + $0x18] sm:$0xff]
    %v1470 = vld [vmem:[%s3 + $0x20] sm:$0xff]
    %v1471 = vld [vmem:[%s3 + $0x28] sm:$0xff]
    %v1472 = vld [vmem:[%s3 + $0x30] sm:$0xff]
    %v1473 = vld [vmem:[%s3 + $0x38] sm:$0xff]
    %v1474 = vld [vmem:[%s3 + $0x40] sm:$0xff]
    %v1475 = vld [vmem:[%s3 + $0x48] sm:$0xff]
    %v1476 = vld [vmem:[%s3 + $0x50] sm:$0xff]
    %v1477 = vld [vmem:[%s3 + $0x58] sm:$0xff]
    %v1478 = vld [vmem:[%s3 + $0x60] sm:$0xff]
    %v1479 = vld [vmem:[%s3 + $0x68] sm:$0xff]
    %v1480 = vld [vmem:[%s3 + $0x70] sm:$0xff]
    %v1481 = vld [vmem:[%s3 + $0x78] sm:$0xff]
    %v1482 = vld [vmem:[%s3 + $0x80] sm:$0xff]
    %v1483 = vld [vmem:[%s3 + $0x88] sm:$0xff]
    %v1484 = vld [vmem:[%s3 + $0x90] sm:$0xff]
    %v1485 = vld [vmem:[%s3 + $0x98] sm:$0xff]
    %v1486 = vld [vmem:[%s3 + $0xa0] sm:$0xff]
    %v1487 = vld [vmem:[%s3 + $0xa8] sm:$0xff]
    %v1488 = vld [vmem:[%s3 + $0xb0] sm:$0xff]
    %v1489 = vld [vmem:[%s3 + $0xb8] sm:$0xff]
    %v1490 = vld [vmem:[%s3 + $0xc0] sm:$0xff]
    %v1491 = vld [vmem:[%s3 + $0xc8] sm:$0xff]
    %v1492 = vld [vmem:[%s3 + $0xd0] sm:$0xff]
    %v1493 = vld [vmem:[%s3 + $0xd8] sm:$0xff]
    %v1494 = vld [vmem:[%s3 + $0xe0] sm:$0xff]
    %v1495 = vld [vmem:[%s3 + $0xe8] sm:$0xff]
    %v1496 = vld [vmem:[%s3 + $0xf0] sm:$0xff]
    %v1497 = vld [vmem:[%s3 + $0xf8] sm:$0xff]
    %v1498 = vld [vmem:[%s3 + $0x100] sm:$0xff]
    %v1499 = vld [vmem:[%s3 + $0x108] sm:$0xff]
    %v1500 = vld [vmem:[%s3 + $0x110] sm:$0xff]
    %v1501 = vld [vmem:[%s3 + $0x118] sm:$0xff]
    %v1502 = vld [vmem:[%s3 + $0x120] sm:$0xff]
    %v1503 = vld [vmem:[%s3 + $0x128] sm:$0xff]
    %v1504 = vld [vmem:[%s3 + $0x130] sm:$0xff]
    %v1505 = vld [vmem:[%s3 + $0x138] sm:$0xff]
    %v1506 = vld [vmem:[%s3 + $0x140] sm:$0xff]
    %v1507 = vld [vmem:[%s3 + $0x148] sm:$0xff]
    %v1508 = vld [vmem:[%s3 + $0x150] sm:$0xff]
    %v1509 = vld [vmem:[%s3 + $0x158] sm:$0xff]
    %v1510 = vld [vmem:[%s3 + $0x160] sm:$0xff]
    %v1511 = vld [vmem:[%s3 + $0x168] sm:$0xff]
    %v1512 = vld [vmem:[%s3 + $0x170] sm:$0xff]
    %v1513 = vld [vmem:[%s3 + $0x178] sm:$0xff]
    %v1514 = vld [vmem:[%s3 + $0x180] sm:$0xff]
    %v1515 = vld [vmem:[%s3 + $0x188] sm:$0xff]
    %v1516 = vld [vmem:[%s3 + $0x190] sm:$0xff]
    %v1517 = vld [vmem:[%s3 + $0x198] sm:$0xff]
    %v1518 = vld [vmem:[%s3 + $0x1a0] sm:$0xff]
    %v1519 = vld [vmem:[%s3 + $0x1a8] sm:$0xff]
    %v1520 = vld [vmem:[%s3 + $0x1b0] sm:$0x3f]
    %v1521 = vld [vmem:[%s3 + $0x1b8] sm:$0x3f]
    %v1522 = vld [vmem:[%s3 + $0x1c0] sm:$0x3f]
    %v1523 = vld [vmem:[%s4] sm:$0xff]
    %v1524 = vld [vmem:[%s4 + $0x8] sm:$0xff]
    %v1525 = vld [vmem:[%s4 + $0x10] sm:$0xff]
    %v1526 = vld [vmem:[%s4 + $0x18] sm:$0xff]
    %v1527 = vld [vmem:[%s4 + $0x20] sm:$0xff]
    %v1528 = vld [vmem:[%s4 + $0x28] sm:$0xff]
    %v1529 = vld [vmem:[%s4 + $0x30] sm:$0xff]
    %v1530 = vld [vmem:[%s4 + $0x38] sm:$0xff]
    %v1531 = vld [vmem:[%s4 + $0x40] sm:$0xff]
    %v1532 = vld [vmem:[%s4 + $0x48] sm:$0xff]
    %v1533 = vld [vmem:[%s4 + $0x50] sm:$0xff]
    %v1534 = vld [vmem:[%s4 + $0x58] sm:$0xff]
    %v1535 = vld [vmem:[%s4 + $0x60] sm:$0xff]
    %v1536 = vld [vmem:[%s4 + $0x68] sm:$0xff]
    %v1537 = vld [vmem:[%s4 + $0x70] sm:$0xff]
    %v1538 = vld [vmem:[%s4 + $0x78] sm:$0xff]
    %v1539 = vld [vmem:[%s4 + $0x80] sm:$0xff]
    %v1540 = vld [vmem:[%s4 + $0x88] sm:$0xff]
    %v1541 = vld [vmem:[%s4 + $0x90] sm:$0x3f]
    %1543 = vset.pattern.permute.xlu0 0
    %1544 = vperm.xlu0 %1543, %v1523
    %v1545 = vpop.permute.xlu0 %1544
    %1548 = vset.pattern.permute.xlu0 0
    %1549 = vperm.xlu0 %1548, %v1524
    %v1550 = vpop.permute.xlu0 %1549
    %1553 = vset.pattern.permute.xlu0 0
    %1554 = vperm.xlu0 %1553, %v1525
    %v1555 = vpop.permute.xlu0 %1554
    %1558 = vset.pattern.permute.xlu0 0
    %1559 = vperm.xlu0 %1558, %v1526
    %v1560 = vpop.permute.xlu0 %1559
    %1563 = vset.pattern.permute.xlu0 0
    %1564 = vperm.xlu0 %1563, %v1527
    %v1565 = vpop.permute.xlu0 %1564
    %1568 = vset.pattern.permute.xlu0 0
    %1569 = vperm.xlu0 %1568, %v1528
    %v1570 = vpop.permute.xlu0 %1569
    %1573 = vset.pattern.permute.xlu0 0
    %1574 = vperm.xlu0 %1573, %v1529
    %v1575 = vpop.permute.xlu0 %1574
    %1578 = vset.pattern.permute.xlu0 0
    %1579 = vperm.xlu0 %1578, %v1530
    %v1580 = vpop.permute.xlu0 %1579
    %1583 = vset.pattern.permute.xlu0 0
    %1584 = vperm.xlu0 %1583, %v1531
    %v1585 = vpop.permute.xlu0 %1584
    %1588 = vset.pattern.permute.xlu0 0
    %1589 = vperm.xlu0 %1588, %v1532
    %v1590 = vpop.permute.xlu0 %1589
    %1593 = vset.pattern.permute.xlu0 0
    %1594 = vperm.xlu0 %1593, %v1533
    %v1595 = vpop.permute.xlu0 %1594
    %1598 = vset.pattern.permute.xlu0 0
    %1599 = vperm.xlu0 %1598, %v1534
    %v1600 = vpop.permute.xlu0 %1599
    %1603 = vset.pattern.permute.xlu0 0
    %1604 = vperm.xlu0 %1603, %v1535
    %v1605 = vpop.permute.xlu0 %1604
    %1608 = vset.pattern.permute.xlu0 0
    %1609 = vperm.xlu0 %1608, %v1536
    %v1610 = vpop.permute.xlu0 %1609
    %1613 = vset.pattern.permute.xlu0 0
    %1614 = vperm.xlu0 %1613, %v1537
    %v1615 = vpop.permute.xlu0 %1614
    %1618 = vset.pattern.permute.xlu0 0
    %1619 = vperm.xlu0 %1618, %v1538
    %v1620 = vpop.permute.xlu0 %1619
    %1623 = vset.pattern.permute.xlu0 0
    %1624 = vperm.xlu0 %1623, %v1539
    %v1625 = vpop.permute.xlu0 %1624
    %1628 = vset.pattern.permute.xlu0 0
    %1629 = vperm.xlu0 %1628, %v1540
    %v1630 = vpop.permute.xlu0 %1629
    %1633 = vset.pattern.permute.xlu0 0
    %1634 = vperm.xlu0 %1633, %v1541
    %v1635 = vpop.permute.xlu0 %1634
    %vm1637 = vcmask 359424
    %v1639 = vsel %vm1637, %v1468, 0
    %v1642 = vsel %vm1637, %v1471, 0
    %v1645 = vsel %vm1637, %v1474, 0
    %v1648 = vsel %vm1637, %v1477, 0
    %v1651 = vsel %vm1637, %v1480, 0
    %v1654 = vsel %vm1637, %v1483, 0
    %v1657 = vsel %vm1637, %v1486, 0
    %v1660 = vsel %vm1637, %v1489, 0
    %v1663 = vsel %vm1637, %v1492, 0
    %v1666 = vsel %vm1637, %v1495, 0
    %v1669 = vsel %vm1637, %v1498, 0
    %v1672 = vsel %vm1637, %v1501, 0
    %v1675 = vsel %vm1637, %v1504, 0
    %v1678 = vsel %vm1637, %v1507, 0
    %v1681 = vsel %vm1637, %v1510, 0
    %v1684 = vsel %vm1637, %v1513, 0
    %v1687 = vsel %vm1637, %v1516, 0
    %v1690 = vsel %vm1637, %v1519, 0
    %v1693 = vsel %vm1637, %v1522, 0
    %vm1695 = vcmask 1043456
    %v1697 = vsel %vm1695, %v1465, 0
    %1699 = vmatprep.subr.mxu0 0.0
    %1700 = vmatpush1.msra.mxu0 %v1443
    %1701 = vmatprep.subr.mxu0 0.0
    %1702 = vmatpush1.msra.mxu0 %v1442
    %1703 = vmatprep.subr.mxu0 0.0
    %1704 = vmatpush1.msra.mxu0 %v1441
    %1705 = vmatprep.subr.mxu0 0.0
    %1706 = vmatpush1.msra.mxu0 %v1440
    %1707 = vmatprep.subr.mxu0 0.0
    %1708 = vmatpush1.msra.mxu0 %v1439
    %1709 = vmatprep.subr.mxu0 0.0
    %1710 = vmatpush1.msra.mxu0 %v1438
    %1711 = vmatprep.subr.mxu0 0.0
    %1712 = vmatpush1.msra.mxu0 %v1437
    %1713 = vmatprep.subr.mxu0 0.0
    %1714 = vmatpush1.msra.mxu0 %v1436
    %1715 = vmatprep.subr.mxu0 0.0
    %1716 = vmatpush1.msra.mxu0 %v1435
    %1717 = vmatprep.subr.mxu0 0.0
    %1718 = vmatpush1.msra.mxu0 %v1434
    %1719 = vmatprep.subr.mxu0 0.0
    %1720 = vmatpush1.msra.mxu0 %v1433
    %1721 = vmatprep.subr.mxu0 0.0
    %1722 = vmatpush1.msra.mxu0 %v1432
    %1723 = vmatprep.subr.mxu0 0.0
    %1724 = vmatpush1.msra.mxu0 %v1431
    %1725 = vmatprep.subr.mxu0 0.0
    %1726 = vmatpush1.msra.mxu0 %v1430
    %1727 = vmatprep.subr.mxu0 0.0
    %1728 = vmatpush1.msra.mxu0 %v1429
    %1729 = vmatprep.subr.mxu0 0.0
    %1730 = vmatpush1.msra.mxu0 %v1428
    %1731 = vmatprep.subr.mxu0 0.0
    %1732 = vmatpush2.msra.mxu0 %v1459
    %1733 = vmatprep.subr.mxu0 0.0
    %1734 = vmatpush2.msra.mxu0 %v1458
    %1735 = vmatprep.subr.mxu0 0.0
    %1736 = vmatpush2.msra.mxu0 %v1457
    %1737 = vmatprep.subr.mxu0 0.0
    %1738 = vmatpush2.msra.mxu0 %v1456
    %1739 = vmatprep.subr.mxu0 0.0
    %1740 = vmatpush2.msra.mxu0 %v1455
    %1741 = vmatprep.subr.mxu0 0.0
    %1742 = vmatpush2.msra.mxu0 %v1454
    %1743 = vmatprep.subr.mxu0 0.0
    %1744 = vmatpush2.msra.mxu0 %v1453
    %1745 = vmatprep.subr.mxu0 0.0
    %1746 = vmatpush2.msra.mxu0 %v1452
    %1747 = vmatprep.subr.mxu0 0.0
    %1748 = vmatpush2.msra.mxu0 %v1451
    %1749 = vmatprep.subr.mxu0 0.0
    %1750 = vmatpush2.msra.mxu0 %v1450
    %1751 = vmatprep.subr.mxu0 0.0
    %1752 = vmatpush2.msra.mxu0 %v1449
    %1753 = vmatprep.subr.mxu0 0.0
    %1754 = vmatpush2.msra.mxu0 %v1448
    %1755 = vmatprep.subr.mxu0 0.0
    %1756 = vmatpush2.msra.mxu0 %v1447
    %1757 = vmatprep.subr.mxu0 0.0
    %1758 = vmatpush2.msra.mxu0 %v1446
    %1759 = vmatprep.subr.mxu0 0.0
    %1760 = vmatpush2.msra.mxu0 %v1445
    %1761 = vmatprep.subr.mxu0 0.0
    %1762 = vmatpush2.msra.mxu0 %v1444
    %1763 = vmatprep.mubr.f32.mxu0 %v1467
    %1764 = vmatmul.mubr.f32.gmra.mxu0 %v1466
    %v1765 = vpop.f32.mrf.mxu0
    %v1766 = vadd.f32 %v1545, %v1765
    %v1767 = vpop.f32.mrf.mxu0
    %1768 = vmatprep.mubr.f32.mxu0 %v1470
    %1769 = vmatmul.mubr.f32.gmra.mxu0 %v1469
    %v1770 = vpop.f32.mrf.mxu0
    %v1771 = vadd.f32 %v1550, %v1770
    %v1772 = vpop.f32.mrf.mxu0
    %1773 = vmatprep.mubr.f32.mxu0 %v1473
    %1774 = vmatmul.mubr.f32.gmra.mxu0 %v1472
    %v1775 = vpop.f32.mrf.mxu0
    %v1776 = vadd.f32 %v1555, %v1775
    %v1777 = vpop.f32.mrf.mxu0
    %1778 = vmatprep.mubr.f32.mxu0 %v1476
    %1779 = vmatmul.mubr.f32.gmra.mxu0 %v1475
    %v1780 = vpop.f32.mrf.mxu0
    %v1781 = vadd.f32 %v1560, %v1780
    %v1782 = vpop.f32.mrf.mxu0
    %1783 = vmatprep.mubr.f32.mxu0 %v1479
    %1784 = vmatmul.mubr.f32.gmra.mxu0 %v1478
    %v1785 = vpop.f32.mrf.mxu0
    %v1786 = vadd.f32 %v1565, %v1785
    %v1787 = vpop.f32.mrf.mxu0
    %1788 = vmatprep.mubr.f32.mxu0 %v1482
    %1789 = vmatmul.mubr.f32.gmra.mxu0 %v1481
    %v1790 = vpop.f32.mrf.mxu0
    %v1791 = vadd.f32 %v1570, %v1790
    %v1792 = vpop.f32.mrf.mxu0
    %1793 = vmatprep.mubr.f32.mxu0 %v1485
    %1794 = vmatmul.mubr.f32.gmra.mxu0 %v1484
    %v1795 = vpop.f32.mrf.mxu0
    %v1796 = vadd.f32 %v1575, %v1795
    %v1797 = vpop.f32.mrf.mxu0
    %1798 = vmatprep.mubr.f32.mxu0 %v1488
    %1799 = vmatmul.mubr.f32.gmra.mxu0 %v1487
    %v1800 = vpop.f32.mrf.mxu0
    %v1801 = vadd.f32 %v1580, %v1800
    %v1802 = vpop.f32.mrf.mxu0
    %1803 = vmatprep.mubr.f32.mxu0 %v1491
    %1804 = vmatmul.mubr.f32.gmra.mxu0 %v1490
    %v1805 = vpop.f32.mrf.mxu0
    %v1806 = vadd.f32 %v1585, %v1805
    %v1807 = vpop.f32.mrf.mxu0
    %1808 = vmatprep.mubr.f32.mxu0 %v1494
    %1809 = vmatmul.mubr.f32.gmra.mxu0 %v1493
    %v1810 = vpop.f32.mrf.mxu0
    %v1811 = vadd.f32 %v1590, %v1810
    %v1812 = vpop.f32.mrf.mxu0
    %1813 = vmatprep.mubr.f32.mxu0 %v1497
    %1814 = vmatmul.mubr.f32.gmra.mxu0 %v1496
    %v1815 = vpop.f32.mrf.mxu0
    %v1816 = vadd.f32 %v1595, %v1815
    %v1817 = vpop.f32.mrf.mxu0
    %1818 = vmatprep.mubr.f32.mxu0 %v1500
    %1819 = vmatmul.mubr.f32.gmra.mxu0 %v1499
    %v1820 = vpop.f32.mrf.mxu0
    %v1821 = vadd.f32 %v1600, %v1820
    %v1822 = vpop.f32.mrf.mxu0
    %1823 = vmatprep.mubr.f32.mxu0 %v1503
    %1824 = vmatmul.mubr.f32.gmra.mxu0 %v1502
    %v1825 = vpop.f32.mrf.mxu0
    %v1826 = vadd.f32 %v1605, %v1825
    %v1827 = vpop.f32.mrf.mxu0
    %1828 = vmatprep.mubr.f32.mxu0 %v1506
    %1829 = vmatmul.mubr.f32.gmra.mxu0 %v1505
    %v1830 = vpop.f32.mrf.mxu0
    %v1831 = vadd.f32 %v1610, %v1830
    %v1832 = vpop.f32.mrf.mxu0
    %1833 = vmatprep.mubr.f32.mxu0 %v1509
    %1834 = vmatmul.mubr.f32.gmra.mxu0 %v1508
    %v1835 = vpop.f32.mrf.mxu0
    %v1836 = vadd.f32 %v1615, %v1835
    %v1837 = vpop.f32.mrf.mxu0
    %1838 = vmatprep.mubr.f32.mxu0 %v1512
    %1839 = vmatmul.mubr.f32.gmra.mxu0 %v1511
    %v1840 = vpop.f32.mrf.mxu0
    %v1841 = vadd.f32 %v1620, %v1840
    %v1842 = vpop.f32.mrf.mxu0
    %1843 = vmatprep.mubr.f32.mxu0 %v1515
    %1844 = vmatmul.mubr.f32.gmra.mxu0 %v1514
    %v1845 = vpop.f32.mrf.mxu0
    %v1846 = vadd.f32 %v1625, %v1845
    %v1847 = vpop.f32.mrf.mxu0
    %1848 = vmatprep.mubr.f32.mxu0 %v1518
    %1849 = vmatmul.mubr.f32.gmra.mxu0 %v1517
    %v1850 = vpop.f32.mrf.mxu0
    %v1851 = vadd.f32 %v1630, %v1850
    %v1852 = vpop.f32.mrf.mxu0
    %1853 = vmatprep.mubr.f32.mxu0 %v1521
    %1854 = vmatmul.mubr.f32.gmra.mxu0 %v1520
    %v1855 = vpop.f32.mrf.mxu0
    %v1856 = vadd.f32 %v1635, %v1855
    %v1857 = vpop.f32.mrf.mxu0
    %1858 = vdwg.mxu0
    %1859 = vmatprep.subr.mxu0 0.0
    %1860 = vmatpush1.msra.mxu0 0.0
    %1861 = vmatprep.subr.mxu0 0.0
    %1862 = vmatpush1.msra.mxu0 0.0
    %1863 = vmatprep.subr.mxu0 0.0
    %1864 = vmatpush1.msra.mxu0 0.0
    %1865 = vmatprep.subr.mxu0 0.0
    %1866 = vmatpush1.msra.mxu0 0.0
    %1867 = vmatprep.subr.mxu0 0.0
    %1868 = vmatpush1.msra.mxu0 0.0
    %1869 = vmatprep.subr.mxu0 0.0
    %1870 = vmatpush1.msra.mxu0 0.0
    %1871 = vmatprep.subr.mxu0 0.0
    %1872 = vmatpush1.msra.mxu0 0.0
    %1873 = vmatprep.subr.mxu0 0.0
    %1874 = vmatpush1.msra.mxu0 0.0
    %1875 = vmatprep.subr.mxu0 0.0
    %1876 = vmatpush1.msra.mxu0 0.0
    %1877 = vmatprep.subr.mxu0 0.0
    %1878 = vmatpush1.msra.mxu0 0.0
    %1879 = vmatprep.subr.mxu0 0.0
    %1880 = vmatpush1.msra.mxu0 %v1697
    %1881 = vmatprep.subr.mxu0 0.0
    %1882 = vmatpush1.msra.mxu0 %v1464
    %1883 = vmatprep.subr.mxu0 0.0
    %1884 = vmatpush1.msra.mxu0 %v1463
    %1885 = vmatprep.subr.mxu0 0.0
    %1886 = vmatpush1.msra.mxu0 %v1462
    %1887 = vmatprep.subr.mxu0 0.0
    %1888 = vmatpush1.msra.mxu0 %v1461
    %1889 = vmatprep.subr.mxu0 0.0
    %1890 = vmatpush1.msra.mxu0 %v1460
    %1891 = vmatprep.subr.mxu0 0.0
    %1892 = vmatpush2.msra.mxu0 0.0
    %1893 = vmatprep.subr.mxu0 0.0
    %1894 = vmatpush2.msra.mxu0 0.0
    %1895 = vmatprep.subr.mxu0 0.0
    %1896 = vmatpush2.msra.mxu0 0.0
    %1897 = vmatprep.subr.mxu0 0.0
    %1898 = vmatpush2.msra.mxu0 0.0
    %1899 = vmatprep.subr.mxu0 0.0
    %1900 = vmatpush2.msra.mxu0 0.0
    %1901 = vmatprep.subr.mxu0 0.0
    %1902 = vmatpush2.msra.mxu0 0.0
    %1903 = vmatprep.subr.mxu0 0.0
    %1904 = vmatpush2.msra.mxu0 0.0
    %1905 = vmatprep.subr.mxu0 0.0
    %1906 = vmatpush2.msra.mxu0 0.0
    %1907 = vmatprep.subr.mxu0 0.0
    %1908 = vmatpush2.msra.mxu0 0.0
    %1909 = vmatprep.subr.mxu0 0.0
    %1910 = vmatpush2.msra.mxu0 0.0
    %1911 = vmatprep.subr.mxu0 0.0
    %1912 = vmatpush2.msra.mxu0 0.0
    %1913 = vmatprep.subr.mxu0 0.0
    %1914 = vmatpush2.msra.mxu0 0.0
    %1915 = vmatprep.subr.mxu0 0.0
    %1916 = vmatpush2.msra.mxu0 0.0
    %1917 = vmatprep.subr.mxu0 0.0
    %1918 = vmatpush2.msra.mxu0 0.0
    %1919 = vmatprep.subr.mxu0 0.0
    %1920 = vmatpush2.msra.mxu0 0.0
    %1921 = vmatprep.subr.mxu0 0.0
    %1922 = vmatpush2.msra.mxu0 0.0
    %1923 = vmatprep.mubr.f32.mxu0 0.0
    %1924 = vmatmul.mubr.f32.gmra.mxu0 %v1639
    %v1925 = vpop.f32.mrf.mxu0
    %v1926 = vadd.f32 %v1766, %v1925
    %v1927 = vpop.f32.mrf.mxu0
    %1928 = vmatprep.mubr.f32.mxu0 0.0
    %1929 = vmatmul.mubr.f32.gmra.mxu0 %v1642
    %v1930 = vpop.f32.mrf.mxu0
    %v1931 = vadd.f32 %v1771, %v1930
    %v1932 = vpop.f32.mrf.mxu0
    %1933 = vmatprep.mubr.f32.mxu0 0.0
    %1934 = vmatmul.mubr.f32.gmra.mxu0 %v1645
    %v1935 = vpop.f32.mrf.mxu0
    %v1936 = vadd.f32 %v1776, %v1935
    %v1937 = vpop.f32.mrf.mxu0
    %1938 = vmatprep.mubr.f32.mxu0 0.0
    %1939 = vmatmul.mubr.f32.gmra.mxu0 %v1648
    %v1940 = vpop.f32.mrf.mxu0
    %v1941 = vadd.f32 %v1781, %v1940
    %v1942 = vpop.f32.mrf.mxu0
    %1943 = vmatprep.mubr.f32.mxu0 0.0
    %1944 = vmatmul.mubr.f32.gmra.mxu0 %v1651
    %v1945 = vpop.f32.mrf.mxu0
    %v1946 = vadd.f32 %v1786, %v1945
    %v1947 = vpop.f32.mrf.mxu0
    %1948 = vmatprep.mubr.f32.mxu0 0.0
    %1949 = vmatmul.mubr.f32.gmra.mxu0 %v1654
    %v1950 = vpop.f32.mrf.mxu0
    %v1951 = vadd.f32 %v1791, %v1950
    %v1952 = vpop.f32.mrf.mxu0
    %1953 = vmatprep.mubr.f32.mxu0 0.0
    %1954 = vmatmul.mubr.f32.gmra.mxu0 %v1657
    %v1955 = vpop.f32.mrf.mxu0
    %v1956 = vadd.f32 %v1796, %v1955
    %v1957 = vpop.f32.mrf.mxu0
    %1958 = vmatprep.mubr.f32.mxu0 0.0
    %1959 = vmatmul.mubr.f32.gmra.mxu0 %v1660
    %v1960 = vpop.f32.mrf.mxu0
    %v1961 = vadd.f32 %v1801, %v1960
    %v1962 = vpop.f32.mrf.mxu0
    %1963 = vmatprep.mubr.f32.mxu0 0.0
    %1964 = vmatmul.mubr.f32.gmra.mxu0 %v1663
    %v1965 = vpop.f32.mrf.mxu0
    %v1966 = vadd.f32 %v1806, %v1965
    %v1967 = vpop.f32.mrf.mxu0
    %1968 = vmatprep.mubr.f32.mxu0 0.0
    %1969 = vmatmul.mubr.f32.gmra.mxu0 %v1666
    %v1970 = vpop.f32.mrf.mxu0
    %v1971 = vadd.f32 %v1811, %v1970
    %v1972 = vpop.f32.mrf.mxu0
    %1973 = vmatprep.mubr.f32.mxu0 0.0
    %1974 = vmatmul.mubr.f32.gmra.mxu0 %v1669
    %v1975 = vpop.f32.mrf.mxu0
    %v1976 = vadd.f32 %v1816, %v1975
    %v1977 = vpop.f32.mrf.mxu0
    %1978 = vmatprep.mubr.f32.mxu0 0.0
    %1979 = vmatmul.mubr.f32.gmra.mxu0 %v1672
    %v1980 = vpop.f32.mrf.mxu0
    %v1981 = vadd.f32 %v1821, %v1980
    %v1982 = vpop.f32.mrf.mxu0
    %1983 = vmatprep.mubr.f32.mxu0 0.0
    %1984 = vmatmul.mubr.f32.gmra.mxu0 %v1675
    %v1985 = vpop.f32.mrf.mxu0
    %v1986 = vadd.f32 %v1826, %v1985
    %v1987 = vpop.f32.mrf.mxu0
    %1988 = vmatprep.mubr.f32.mxu0 0.0
    %1989 = vmatmul.mubr.f32.gmra.mxu0 %v1678
    %v1990 = vpop.f32.mrf.mxu0
    %v1991 = vadd.f32 %v1831, %v1990
    %v1992 = vpop.f32.mrf.mxu0
    %1993 = vmatprep.mubr.f32.mxu0 0.0
    %1994 = vmatmul.mubr.f32.gmra.mxu0 %v1681
    %v1995 = vpop.f32.mrf.mxu0
    %v1996 = vadd.f32 %v1836, %v1995
    %v1997 = vpop.f32.mrf.mxu0
    %1998 = vmatprep.mubr.f32.mxu0 0.0
    %1999 = vmatmul.mubr.f32.gmra.mxu0 %v1684
    %v2000 = vpop.f32.mrf.mxu0
    %v2001 = vadd.f32 %v1841, %v2000
    %v2002 = vpop.f32.mrf.mxu0
    %2003 = vmatprep.mubr.f32.mxu0 0.0
    %2004 = vmatmul.mubr.f32.gmra.mxu0 %v1687
    %v2005 = vpop.f32.mrf.mxu0
    %v2006 = vadd.f32 %v1846, %v2005
    %v2007 = vpop.f32.mrf.mxu0
    %2008 = vmatprep.mubr.f32.mxu0 0.0
    %2009 = vmatmul.mubr.f32.gmra.mxu0 %v1690
    %v2010 = vpop.f32.mrf.mxu0
    %v2011 = vadd.f32 %v1851, %v2010
    %v2012 = vpop.f32.mrf.mxu0
    %2013 = vmatprep.mubr.f32.mxu0 0.0
    %2014 = vmatmul.mubr.f32.gmra.mxu0 %v1693
    %v2015 = vpop.f32.mrf.mxu0
    %v2016 = vadd.f32 %v1856, %v2015
    %v2017 = vpop.f32.mrf.mxu0
    %2018 = vdwg.mxu0
    %v2019 = vmax.f32 %v1926, 0.0
    %v2020 = vmax.f32 %v1931, 0.0
    %v2021 = vmax.f32 %v1936, 0.0
    %v2022 = vmax.f32 %v1941, 0.0
    %v2023 = vmax.f32 %v1946, 0.0
    %v2024 = vmax.f32 %v1951, 0.0
    %v2025 = vmax.f32 %v1956, 0.0
    %v2026 = vmax.f32 %v1961, 0.0
    %v2027 = vmax.f32 %v1966, 0.0
    %v2028 = vmax.f32 %v1971, 0.0
    %v2029 = vmax.f32 %v1976, 0.0
    %v2030 = vmax.f32 %v1981, 0.0
    %v2031 = vmax.f32 %v1986, 0.0
    %v2032 = vmax.f32 %v1991, 0.0
    %v2033 = vmax.f32 %v1996, 0.0
    %v2034 = vmax.f32 %v2001, 0.0
    %v2035 = vmax.f32 %v2006, 0.0
    %v2036 = vmax.f32 %v2011, 0.0
    %v2037 = vmax.f32 %v2016, 0.0
    %v2038 = vld [vmem:[%s5] sm:$0xff]
    %v2039 = vld [vmem:[%s5 + $0x8] sm:$0xff]
    %v2040 = vld [vmem:[%s5 + $0x10] sm:$0xff]
    %v2041 = vld [vmem:[%s5 + $0x18] sm:$0xff]
    %v2042 = vld [vmem:[%s5 + $0x20] sm:$0xff]
    %v2043 = vld [vmem:[%s5 + $0x28] sm:$0xff]
    %v2044 = vld [vmem:[%s5 + $0x30] sm:$0xff]
    %v2045 = vld [vmem:[%s5 + $0x38] sm:$0xff]
    %v2046 = vld [vmem:[%s5 + $0x40] sm:$0xff]
    %v2047 = vld [vmem:[%s5 + $0x48] sm:$0xff]
    %v2048 = vld [vmem:[%s5 + $0x50] sm:$0xff]
    %v2049 = vld [vmem:[%s5 + $0x58] sm:$0xff]
    %v2050 = vld [vmem:[%s5 + $0x60] sm:$0xff]
    %v2051 = vld [vmem:[%s5 + $0x68] sm:$0xff]
    %v2052 = vld [vmem:[%s5 + $0x70] sm:$0xff]
    %v2053 = vld [vmem:[%s5 + $0x78] sm:$0xff]
    %v2054 = vld [vmem:[%s5 + $0x80] sm:$0x3f]
    %v2055 = vld [vmem:[%s5 + $0x88] sm:$0x3f]
    %v2056 = vld [vmem:[%s6] sm:$0xff]
    %v2057 = vld [vmem:[%s6 + $0x8] sm:$0xff]
    %v2058 = vld [vmem:[%s6 + $0x10] sm:$0xff]
    %v2059 = vld [vmem:[%s6 + $0x18] sm:$0xff]
    %v2060 = vld [vmem:[%s6 + $0x20] sm:$0xff]
    %v2061 = vld [vmem:[%s6 + $0x28] sm:$0xff]
    %v2062 = vld [vmem:[%s6 + $0x30] sm:$0xff]
    %v2063 = vld [vmem:[%s6 + $0x38] sm:$0xff]
    %v2064 = vld [vmem:[%s6 + $0x40] sm:$0x3f]
    %2066 = vset.pattern.permute.xlu0 0
    %2067 = vperm.xlu0 %2066, %v2056
    %v2068 = vpop.permute.xlu0 %2067
    %2071 = vset.pattern.permute.xlu0 0
    %2072 = vperm.xlu0 %2071, %v2057
    %v2073 = vpop.permute.xlu0 %2072
    %2076 = vset.pattern.permute.xlu0 0
    %2077 = vperm.xlu0 %2076, %v2058
    %v2078 = vpop.permute.xlu0 %2077
    %2081 = vset.pattern.permute.xlu0 0
    %2082 = vperm.xlu0 %2081, %v2059
    %v2083 = vpop.permute.xlu0 %2082
    %2086 = vset.pattern.permute.xlu0 0
    %2087 = vperm.xlu0 %2086, %v2060
    %v2088 = vpop.permute.xlu0 %2087
    %2091 = vset.pattern.permute.xlu0 0
    %2092 = vperm.xlu0 %2091, %v2061
    %v2093 = vpop.permute.xlu0 %2092
    %2096 = vset.pattern.permute.xlu0 0
    %2097 = vperm.xlu0 %2096, %v2062
    %v2098 = vpop.permute.xlu0 %2097
    %2101 = vset.pattern.permute.xlu0 0
    %2102 = vperm.xlu0 %2101, %v2063
    %v2103 = vpop.permute.xlu0 %2102
    %2106 = vset.pattern.permute.xlu0 0
    %2107 = vperm.xlu0 %2106, %v2064
    %v2108 = vpop.permute.xlu0 %2107
    %vm2110 = vcmask 179200
    %v2112 = vsel %vm2110, %v2039, 0
    %v2115 = vsel %vm2110, %v2041, 0
    %v2118 = vsel %vm2110, %v2043, 0
    %v2121 = vsel %vm2110, %v2045, 0
    %v2124 = vsel %vm2110, %v2047, 0
    %v2127 = vsel %vm2110, %v2049, 0
    %v2130 = vsel %vm2110, %v2051, 0
    %v2133 = vsel %vm2110, %v2053, 0
    %v2136 = vsel %vm2110, %v2055, 0
    %vm2138 = vcmask 1045504
    %v2140 = vsel %vm2138, %v2037, 0
    %2142 = vmatprep.subr.mxu0 0.0
    %2143 = vmatpush1.msra.mxu0 %v2034
    %2144 = vmatprep.subr.mxu0 0.0
    %2145 = vmatpush1.msra.mxu0 %v2033
    %2146 = vmatprep.subr.mxu0 0.0
    %2147 = vmatpush1.msra.mxu0 %v2032
    %2148 = vmatprep.subr.mxu0 0.0
    %2149 = vmatpush1.msra.mxu0 %v2031
    %2150 = vmatprep.subr.mxu0 0.0
    %2151 = vmatpush1.msra.mxu0 %v2030
    %2152 = vmatprep.subr.mxu0 0.0
    %2153 = vmatpush1.msra.mxu0 %v2029
    %2154 = vmatprep.subr.mxu0 0.0
    %2155 = vmatpush1.msra.mxu0 %v2028
    %2156 = vmatprep.subr.mxu0 0.0
    %2157 = vmatpush1.msra.mxu0 %v2027
    %2158 = vmatprep.subr.mxu0 0.0
    %2159 = vmatpush1.msra.mxu0 %v2026
    %2160 = vmatprep.subr.mxu0 0.0
    %2161 = vmatpush1.msra.mxu0 %v2025
    %2162 = vmatprep.subr.mxu0 0.0
    %2163 = vmatpush1.msra.mxu0 %v2024
    %2164 = vmatprep.subr.mxu0 0.0
    %2165 = vmatpush1.msra.mxu0 %v2023
    %2166 = vmatprep.subr.mxu0 0.0
    %2167 = vmatpush1.msra.mxu0 %v2022
    %2168 = vmatprep.subr.mxu0 0.0
    %2169 = vmatpush1.msra.mxu0 %v2021
    %2170 = vmatprep.subr.mxu0 0.0
    %2171 = vmatpush1.msra.mxu0 %v2020
    %2172 = vmatprep.subr.mxu0 0.0
    %2173 = vmatpush1.msra.mxu0 %v2019
    %2174 = vmatprep.subr.mxu0 0.0
    %2175 = vmatpush2.msra.mxu0 0.0
    %2176 = vmatprep.subr.mxu0 0.0
    %2177 = vmatpush2.msra.mxu0 0.0
    %2178 = vmatprep.subr.mxu0 0.0
    %2179 = vmatpush2.msra.mxu0 0.0
    %2180 = vmatprep.subr.mxu0 0.0
    %2181 = vmatpush2.msra.mxu0 0.0
    %2182 = vmatprep.subr.mxu0 0.0
    %2183 = vmatpush2.msra.mxu0 0.0
    %2184 = vmatprep.subr.mxu0 0.0
    %2185 = vmatpush2.msra.mxu0 0.0
    %2186 = vmatprep.subr.mxu0 0.0
    %2187 = vmatpush2.msra.mxu0 0.0
    %2188 = vmatprep.subr.mxu0 0.0
    %2189 = vmatpush2.msra.mxu0 0.0
    %2190 = vmatprep.subr.mxu0 0.0
    %2191 = vmatpush2.msra.mxu0 0.0
    %2192 = vmatprep.subr.mxu0 0.0
    %2193 = vmatpush2.msra.mxu0 0.0
    %2194 = vmatprep.subr.mxu0 0.0
    %2195 = vmatpush2.msra.mxu0 0.0
    %2196 = vmatprep.subr.mxu0 0.0
    %2197 = vmatpush2.msra.mxu0 0.0
    %2198 = vmatprep.subr.mxu0 0.0
    %2199 = vmatpush2.msra.mxu0 0.0
    %2200 = vmatprep.subr.mxu0 0.0
    %2201 = vmatpush2.msra.mxu0 %v2140
    %2202 = vmatprep.subr.mxu0 0.0
    %2203 = vmatpush2.msra.mxu0 %v2036
    %2204 = vmatprep.subr.mxu0 0.0
    %2205 = vmatpush2.msra.mxu0 %v2035
    %2206 = vmatprep.mubr.f32.mxu0 %v2112
    %2207 = vmatmul.mubr.f32.gmra.mxu0 %v2038
    %v2208 = vpop.f32.mrf.mxu0
    %v2209 = vadd.f32 %v2068, %v2208
    %v2210 = vpop.f32.mrf.mxu0
    %2211 = vmatprep.mubr.f32.mxu0 %v2115
    %2212 = vmatmul.mubr.f32.gmra.mxu0 %v2040
    %v2213 = vpop.f32.mrf.mxu0
    %v2214 = vadd.f32 %v2073, %v2213
    %v2215 = vpop.f32.mrf.mxu0
    %2216 = vmatprep.mubr.f32.mxu0 %v2118
    %2217 = vmatmul.mubr.f32.gmra.mxu0 %v2042
    %v2218 = vpop.f32.mrf.mxu0
    %v2219 = vadd.f32 %v2078, %v2218
    %v2220 = vpop.f32.mrf.mxu0
    %2221 = vmatprep.mubr.f32.mxu0 %v2121
    %2222 = vmatmul.mubr.f32.gmra.mxu0 %v2044
    %v2223 = vpop.f32.mrf.mxu0
    %v2224 = vadd.f32 %v2083, %v2223
    %v2225 = vpop.f32.mrf.mxu0
    %2226 = vmatprep.mubr.f32.mxu0 %v2124
    %2227 = vmatmul.mubr.f32.gmra.mxu0 %v2046
    %v2228 = vpop.f32.mrf.mxu0
    %v2229 = vadd.f32 %v2088, %v2228
    %v2230 = vpop.f32.mrf.mxu0
    %2231 = vmatprep.mubr.f32.mxu0 %v2127
    %2232 = vmatmul.mubr.f32.gmra.mxu0 %v2048
    %v2233 = vpop.f32.mrf.mxu0
    %v2234 = vadd.f32 %v2093, %v2233
    %v2235 = vpop.f32.mrf.mxu0
    %2236 = vmatprep.mubr.f32.mxu0 %v2130
    %2237 = vmatmul.mubr.f32.gmra.mxu0 %v2050
    %v2238 = vpop.f32.mrf.mxu0
    %v2239 = vadd.f32 %v2098, %v2238
    %v2240 = vpop.f32.mrf.mxu0
    %2241 = vmatprep.mubr.f32.mxu0 %v2133
    %2242 = vmatmul.mubr.f32.gmra.mxu0 %v2052
    %v2243 = vpop.f32.mrf.mxu0
    %v2244 = vadd.f32 %v2103, %v2243
    %v2245 = vpop.f32.mrf.mxu0
    %2246 = vmatprep.mubr.f32.mxu0 %v2136
    %2247 = vmatmul.mubr.f32.gmra.mxu0 %v2054
    %v2248 = vpop.f32.mrf.mxu0
    %v2249 = vadd.f32 %v2108, %v2248
    %v2250 = vpop.f32.mrf.mxu0
    %2251 = vdwg.mxu0
    %v2252 = vmax.f32 %v2209, 0.0
    %v2253 = vmax.f32 %v2214, 0.0
    %v2254 = vmax.f32 %v2219, 0.0
    %v2255 = vmax.f32 %v2224, 0.0
    %v2256 = vmax.f32 %v2229, 0.0
    %v2257 = vmax.f32 %v2234, 0.0
    %v2258 = vmax.f32 %v2239, 0.0
    %v2259 = vmax.f32 %v2244, 0.0
    %v2260 = vmax.f32 %v2249, 0.0
    %v2261 = vld [vmem:[%s7] sm:$0xff]
    %v2262 = vld [vmem:[%s7 + $0x8] sm:$0xff]
    %v2263 = vld [vmem:[%s7 + $0x10] sm:$0xf]
    %v2264 = vld [vmem:[%s8] sm:$0xff]
    %v2265 = vld [vmem:[%s8 + $0x8] sm:$0xff]
    %v2266 = vld [vmem:[%s8 + $0x10] sm:$0xf]
    %2268 = vset.pattern.permute.xlu0 0
    %2269 = vperm.xlu0 %2268, %v2264
    %v2270 = vpop.permute.xlu0 %2269
    %2273 = vset.pattern.permute.xlu0 0
    %2274 = vperm.xlu0 %2273, %v2265
    %v2275 = vpop.permute.xlu0 %2274
    %2278 = vset.pattern.permute.xlu0 0
    %2279 = vperm.xlu0 %2278, %v2266
    %v2280 = vpop.permute.xlu0 %2279
    %vm2282 = vcmask 572416
    %v2284 = vsel %vm2282, %v2261, 0
    %v2287 = vsel %vm2282, %v2262, 0
    %v2290 = vsel %vm2282, %v2263, 0
    %v2293 = vsel %vm2138, %v2260, 0
    %2295 = vmatprep.subr.mxu0 0.0
    %2296 = vmatpush1.msra.mxu0 0.0
    %2297 = vmatprep.subr.mxu0 0.0
    %2298 = vmatpush1.msra.mxu0 0.0
    %2299 = vmatprep.subr.mxu0 0.0
    %2300 = vmatpush1.msra.mxu0 0.0
    %2301 = vmatprep.subr.mxu0 0.0
    %2302 = vmatpush1.msra.mxu0 0.0
    %2303 = vmatprep.subr.mxu0 0.0
    %2304 = vmatpush1.msra.mxu0 0.0
    %2305 = vmatprep.subr.mxu0 0.0
    %2306 = vmatpush1.msra.mxu0 0.0
    %2307 = vmatprep.subr.mxu0 0.0
    %2308 = vmatpush1.msra.mxu0 0.0
    %2309 = vmatprep.subr.mxu0 0.0
    %2310 = vmatpush1.msra.mxu0 %v2293
    %2311 = vmatprep.subr.mxu0 0.0
    %2312 = vmatpush1.msra.mxu0 %v2259
    %2313 = vmatprep.subr.mxu0 0.0
    %2314 = vmatpush1.msra.mxu0 %v2258
    %2315 = vmatprep.subr.mxu0 0.0
    %2316 = vmatpush1.msra.mxu0 %v2257
    %2317 = vmatprep.subr.mxu0 0.0
    %2318 = vmatpush1.msra.mxu0 %v2256
    %2319 = vmatprep.subr.mxu0 0.0
    %2320 = vmatpush1.msra.mxu0 %v2255
    %2321 = vmatprep.subr.mxu0 0.0
    %2322 = vmatpush1.msra.mxu0 %v2254
    %2323 = vmatprep.subr.mxu0 0.0
    %2324 = vmatpush1.msra.mxu0 %v2253
    %2325 = vmatprep.subr.mxu0 0.0
    %2326 = vmatpush1.msra.mxu0 %v2252
    %2327 = vmatprep.subr.mxu0 0.0
    %2328 = vmatpush2.msra.mxu0 0.0
    %2329 = vmatprep.subr.mxu0 0.0
    %2330 = vmatpush2.msra.mxu0 0.0
    %2331 = vmatprep.subr.mxu0 0.0
    %2332 = vmatpush2.msra.mxu0 0.0
    %2333 = vmatprep.subr.mxu0 0.0
    %2334 = vmatpush2.msra.mxu0 0.0
    %2335 = vmatprep.subr.mxu0 0.0
    %2336 = vmatpush2.msra.mxu0 0.0
    %2337 = vmatprep.subr.mxu0 0.0
    %2338 = vmatpush2.msra.mxu0 0.0
    %2339 = vmatprep.subr.mxu0 0.0
    %2340 = vmatpush2.msra.mxu0 0.0
    %2341 = vmatprep.subr.mxu0 0.0
    %2342 = vmatpush2.msra.mxu0 0.0
    %2343 = vmatprep.subr.mxu0 0.0
    %2344 = vmatpush2.msra.mxu0 0.0
    %2345 = vmatprep.subr.mxu0 0.0
    %2346 = vmatpush2.msra.mxu0 0.0
    %2347 = vmatprep.subr.mxu0 0.0
    %2348 = vmatpush2.msra.mxu0 0.0
    %2349 = vmatprep.subr.mxu0 0.0
    %2350 = vmatpush2.msra.mxu0 0.0
    %2351 = vmatprep.subr.mxu0 0.0
    %2352 = vmatpush2.msra.mxu0 0.0
    %2353 = vmatprep.subr.mxu0 0.0
    %2354 = vmatpush2.msra.mxu0 0.0
    %2355 = vmatprep.subr.mxu0 0.0
    %2356 = vmatpush2.msra.mxu0 0.0
    %2357 = vmatprep.subr.mxu0 0.0
    %2358 = vmatpush2.msra.mxu0 0.0
    %2359 = vmatprep.mubr.f32.mxu0 0.0
    %2360 = vmatmul.mubr.f32.gmra.mxu0 %v2284
    %v2361 = vpop.f32.mrf.mxu0
    %v2362 = vadd.f32 %v2270, %v2361
    %v2363 = vpop.f32.mrf.mxu0
    %2364 = vmatprep.mubr.f32.mxu0 0.0
    %2365 = vmatmul.mubr.f32.gmra.mxu0 %v2287
    %v2366 = vpop.f32.mrf.mxu0
    %v2367 = vadd.f32 %v2275, %v2366
    %v2368 = vpop.f32.mrf.mxu0
    %2369 = vmatprep.mubr.f32.mxu0 0.0
    %2370 = vmatmul.mubr.f32.gmra.mxu0 %v2290
    %v2371 = vpop.f32.mrf.mxu0
    %v2372 = vadd.f32 %v2280, %v2371
    %v2373 = vpop.f32.mrf.mxu0
    %2374 = vdwg.mxu0
    %v2375 = vmax.f32 %v2362, 0.0
    %v2376 = vmax.f32 %v2367, 0.0
    %v2377 = vmax.f32 %v2372, 0.0
    %v2378 = vld [vmem:[%s9] sm:$0xff]
    %v2379 = vld [vmem:[%s9 + $0x8] sm:$0xff]
    %v2380 = vld [vmem:[%s9 + $0x10] sm:$0xf]
    %2382 = vset.pattern.permute.xlu0 0
    %2383 = vperm.xlu0 %2382, %v2378
    %v2384 = vpop.permute.xlu0 %2383
    %2387 = vset.pattern.permute.xlu0 0
    %2388 = vperm.xlu0 %2387, %v2379
    %v2389 = vpop.permute.xlu0 %2388
    %2392 = vset.pattern.permute.xlu0 0
    %2393 = vperm.xlu0 %2392, %v2380
    %v2394 = vpop.permute.xlu0 %2393
    %v2396 = vmul.f32 %v2375, %v2384
    %v2397 = vmul.f32 %v2376, %v2389
    %v2398 = vmul.f32 %v2377, %v2394
    %vm2399 = vcmask 64512
    %v2400 = vsel %vm2399, %v2396, 0.0
    %v2401 = vsel %vm2399, %v2397, 0.0
    %v2402 = vadd.f32 %v2400, %v2401
    %vm2403 = vcmask 60416
    %v2404 = vsel %vm2403, %v2398, 0.0
    %v2405 = vadd.f32 %v2402, %v2404
    %v2406 = vrot.slane %v2405, 4
    %v2407 = vadd.f32 %v2405, %v2406
    %v2408 = vrot.slane %v2407, 2
    %v2409 = vadd.f32 %v2407, %v2408
    %v2410 = vrot.slane %v2409, 1
    %v2411 = vadd.f32 %v2409, %v2410
    %v2412 = vld [vmem:[#allocation2] sm:$0x1]
    %2414 = vset.pattern.permute.xlu0 0
    %2415 = vperm.xlu0 %2414, %v2412
    %v2416 = vpop.permute.xlu0 %2415
    %v2418 = vlaneseq
    %v2419 = vshrl.u32 %v2418, 7
    %v2420 = vsub.s32 0, %v2419
    %v2421 = vrot.slane %v2416, %v2420
    %v2422 = vadd.f32 %v2411, %v2421
    %vm2423 = vcmask 57344
    %2424 = vst.msk [vmem:[#allocation6] sm:$0x1] %vm2423, %v2422
    // Predicated region
    $region50: #{maml_coat_forward.1} parent=1 // pred_check
      _
    $region51: #{maml_coat_forward.1} parent=1 // pred_check_branch
      %2426 = sbr.rel (0) target = $region53
    $region52: #{maml_coat_forward.1} parent=1 // pred_region
      %s2428 = ssub.s32 16, 16
      %2429 = vsyncadd [#allocation5], %s2428
      %s2431 = sshll.u32 [#allocation6], 4
      %s2432 = int_to_ptr.vmem [resolvable:$true] %s2431
      %2434 = dma.vmem_to_hbm [thread:$0]  %s2432, 16, %s11, [#allocation5]
    $region53: #{maml_coat_forward.1} parent=1 // pred_fallthru
      _
    // Predicated region
    $region54: #{maml_coat_forward.1} parent=1 // pred_check
      _
    $region55: #{maml_coat_forward.1} parent=1 // pred_check_branch
      %2436 = sbr.rel (0) target = $region57
    $region56: #{maml_coat_forward.1} parent=1 // pred_region
      %2437 = dma.done [#allocation5], 16
    $region57: #{maml_coat_forward.1} parent=1 // pred_fallthru
      _
    %2438 = vsyncpa [#allocation4], 1
    %2439 = vsyncpa [#allocation5], 1

</llo_original>
